<compile_context>
chip_gen: v7x
topology: tpu7x:2x2x1
jax: 0.10.0
libtpu: 0.0.40
codegen_flags: <defaults>
</compile_context>

<pallas_src>
import functools

import jax
import jax.numpy as jnp
from jax.experimental import pallas as pl
from jax.experimental.pallas import tpu as pltpu


def _qlinear_kernel(ascale_ref, xc_ref, qw_ref, sc_ref, zpsc_ref, bias_ref,
                    out_ref, *, group_size, gpt):
    """Grid = (M tiles, N tiles, K tiles); K (axis 2) is the reduction axis.

    Per step:
      ascale_ref : (tm, 1)       f32   per-token activation scale (full-K)
      xc_ref     : (tm, tk)      bf16  integer-valued centered activations (xq - a_zp)
      qw_ref     : (tk, tn)      int8  raw quantized weight slab (W^T)
      sc_ref     : (1, gpt, tn)  f32   per-group weight scales for this slab
      zpsc_ref   : (1, gpt, tn)  f32   per-group zero_point * scale
      bias_ref   : (1, tn)       f32
      out_ref    : (tm, tn)      f32   resident accumulator / output
    """
    kk = pl.program_id(2)

    @pl.when(kk == 0)
    def _init():
        out_ref[...] = jnp.zeros_like(out_ref)

    # Small per-slab quant params: read once, index in-register.
    sc_all = sc_ref[...]        # (1, gpt, tn)
    zpsc_all = zpsc_ref[...]    # (1, gpt, tn)

    acc = out_ref[...]
    # Static (unrolled) loop over the quant groups covered by this K slab.
    for g in range(gpt):
        lo = g * group_size
        xg = xc_ref[:, lo:lo + group_size]                        # (tm, G) bf16
        wg = qw_ref[lo:lo + group_size, :].astype(jnp.bfloat16)   # (G, tn) bf16
        # Exact integer matmul on the MXU: |xc| <= 255 and |wq| <= 127 are exact
        # in bf16; the f32 accumulation of <= group_size products stays < 2^24.
        p = jnp.dot(xg, wg, preferred_element_type=jnp.float32)   # (tm, tn)
        # Row-sum of centered activations for the rank-1 zero-point term (XLU).
        s = jnp.sum(xg.astype(jnp.float32), axis=-1, keepdims=True)  # (tm, 1)
        sc = sc_all[:, g, :]                                      # (1, tn)
        zpsc = zpsc_all[:, g, :]                                  # (1, tn)
        acc = acc + p * sc - s * zpsc
    out_ref[...] = acc

    @pl.when(kk == pl.num_programs(2) - 1)
    def _finish():
        # Apply the per-token activation scale once, then the bias.
        out_ref[...] = out_ref[...] * ascale_ref[...] + bias_ref[...]


def _round_up(v, m):
    return ((v + m - 1) // m) * m


def quantized_linear(x, qw_t, scales, zeros, bias, *, group_size):
    """x: (..., M, K) f32; qw_t: (K, N) int8 (unpacked low-bit codes);
    scales/zeros: (K//group_size, N); bias: (N,) f32 or None. Returns (..., M, N) f32."""
    *lead, m, k = x.shape
    k_w, n = qw_t.shape
    assert k_w == k and k % group_size == 0
    num_groups = k // group_size

    x2d = x.reshape(-1, k).astype(jnp.float32)
    m2 = x2d.shape[0]
    if bias is None:
        bias = jnp.zeros((n,), jnp.float32)
    bias = bias.astype(jnp.float32)

    # ---- 8-bit asymmetric per-token activation fake-quant (hoisted to wrapper).
    row_min = jnp.minimum(jnp.min(x2d, axis=-1, keepdims=True), 0.0)
    row_max = jnp.maximum(jnp.max(x2d, axis=-1, keepdims=True), 0.0)
    a_scale = (row_max - row_min) / 255.0
    a_scale = jnp.where(a_scale <= 0.0, 1.0, a_scale)
    a_zp = jnp.clip(-128.0 - jnp.round(row_min / a_scale), -128.0, 127.0)
    xq = jnp.clip(jnp.round(x2d / a_scale) + a_zp, -128.0, 127.0)
    xc = (xq - a_zp).astype(jnp.bfloat16)        # integer-valued in [-255, 255]

    # Precompute zero_point * scale so the in-kernel correction is a single FMA.
    scales_f = scales.astype(jnp.float32)
    zpsc = zeros.astype(jnp.float32) * scales_f

    # ---- tile selection: lane-dense tn, sublane-aligned tm, tk = gpt quant groups.
    gpt = 1
    for c in (8, 4, 2):
        if num_groups % c == 0 and c * group_size <= 2048:
            gpt = c
            break
    tk = gpt * group_size
    nk = k // tk

    n_pad = _round_up(n, 128)
    tn = next(c for c in (512, 256, 128) if n_pad % c == 0)

    m_al = _round_up(max(m2, 1), 8)
    tm = next(c for c in (256, 128, 64, 32, 16, 8) if c <= m_al)
    m_pad = _round_up(m2, tm)

    # v7x has 2 TensorCores: keep at least 2 "parallel" output tiles when possible.
    if (m_pad // tm) * (n_pad // tn) == 1:
        if tn >= 256:
            tn //= 2
        elif tm >= 32:
            tm //= 2

    # ---- zero-pad M / N so every tile is full (sliced off at the end).
    if m_pad != m2:
        pad_r = m_pad - m2
        xc = jnp.pad(xc, ((0, pad_r), (0, 0)))
        a_scale = jnp.pad(a_scale, ((0, pad_r), (0, 0)), constant_values=1.0)
    if n_pad != n:
        pad_c = n_pad - n
        qw_t = jnp.pad(qw_t, ((0, 0), (0, pad_c)))
        scales_f = jnp.pad(scales_f, ((0, 0), (0, pad_c)))
        zpsc = jnp.pad(zpsc, ((0, 0), (0, pad_c)))
        bias = jnp.pad(bias, (0, pad_c))
    bias2d = bias.reshape(1, n_pad)

    # Group params laid out per-K-tile: each K step fetches exactly its gpt groups.
    sc3 = scales_f.reshape(nk, gpt, n_pad)
    zpsc3 = zpsc.reshape(nk, gpt, n_pad)

    grid = (m_pad // tm, n_pad // tn, nk)

    out2d = pl.pallas_call(
        functools.partial(_qlinear_kernel, group_size=group_size, gpt=gpt),
        out_shape=jax.ShapeDtypeStruct((m_pad, n_pad), jnp.float32),
        grid_spec=pltpu.PrefetchScalarGridSpec(
            num_scalar_prefetch=0,
            grid=grid,
            in_specs=[
                pl.BlockSpec((tm, 1), lambda i, j, kk: (i, 0)),            # a_scale
                pl.BlockSpec((tm, tk), lambda i, j, kk: (i, kk)),          # xc (bf16)
                pl.BlockSpec((tk, tn), lambda i, j, kk: (kk, j)),          # weight slab (int8)
                pl.BlockSpec((1, gpt, tn), lambda i, j, kk: (kk, 0, j)),   # scales
                pl.BlockSpec((1, gpt, tn), lambda i, j, kk: (kk, 0, j)),   # zero*scale
                pl.BlockSpec((1, tn), lambda i, j, kk: (0, j)),            # bias
            ],
            out_specs=pl.BlockSpec((tm, tn), lambda i, j, kk: (i, j)),     # resident acc
        ),
        compiler_params=pltpu.CompilerParams(
            dimension_semantics=("parallel", "parallel", "arbitrary")),
    )(a_scale, xc, qw_t, sc3, zpsc3, bias2d)

    out2d = out2d[:m2, :n]
    return out2d.reshape(*lead, m, n)


def _reference(x, qw_t, scales, zeros, bias, *, group_size):
    """Pure-JAX reference of the same quantized-linear math (f32 throughout)."""
    *lead, m, k = x.shape
    n = qw_t.shape[1]
    x2d = x.reshape(-1, k).astype(jnp.float32)
    row_min = jnp.minimum(jnp.min(x2d, axis=-1, keepdims=True), 0.0)
    row_max = jnp.maximum(jnp.max(x2d, axis=-1, keepdims=True), 0.0)
    a_scale = (row_max - row_min) / 255.0
    a_scale = jnp.where(a_scale <= 0.0, 1.0, a_scale)
    a_zp = jnp.clip(-128.0 - jnp.round(row_min / a_scale), -128.0, 127.0)
    xq = jnp.clip(jnp.round(x2d / a_scale) + a_zp, -128.0, 127.0)
    x_dq = (xq - a_zp) * a_scale
    sc_full = jnp.repeat(scales.astype(jnp.float32), group_size, axis=0)   # (K, N)
    zp_full = jnp.repeat(zeros.astype(jnp.float32), group_size, axis=0)    # (K, N)
    w_dq = (qw_t.astype(jnp.float32) - zp_full) * sc_full
    out = x_dq @ w_dq + bias.reshape(1, n)
    return out.reshape(*lead, m, n)


if __name__ == "__main__":
    # Module config: n out-features, k in-features, 4-bit weights, 8-bit acts.
    n, k = 256, 2048
    group_size = 128
    bit_width = 4
    num_groups = k // group_size
    qmin_w, qmax_w = -(2 ** (bit_width - 1)), 2 ** (bit_width - 1) - 1

    key = jax.random.PRNGKey(0)
    k_w, k_s, k_z, k_b, k_x = jax.random.split(key, 5)

    # Deterministic synthetic "unpacked" quantized weight (what packed_weight encodes).
    qw_t = jax.random.randint(k_w, (k, n), qmin_w, qmax_w + 1,
                              dtype=jnp.int32).astype(jnp.int8)       # W^T, int4 codes
    scales = jax.random.uniform(k_s, (num_groups, n), jnp.float32,
                                minval=0.005, maxval=0.02)
    zeros = jax.random.randint(k_z, (num_groups, n), qmin_w, qmax_w + 1,
                               dtype=jnp.int32).astype(jnp.float32)
    bias = 0.1 * jax.random.normal(k_b, (n,), jnp.float32)

    # >=3D input exercises the reshape path of QuantizedLinear.forward; M=14
    # also exercises the row-padding path.
    x = jax.random.normal(k_x, (2, 7, k), jnp.float32)

    out = quantized_linear(x, qw_t, scales, zeros, bias, group_size=group_size)
    out = jax.block_until_ready(out)

    assert out.shape == (2, 7, n), out.shape
    ref = _reference(x, qw_t, scales, zeros, bias, group_size=group_size)
    assert bool(jnp.all(jnp.isfinite(out)))
    assert bool(jnp.allclose(out, ref, rtol=1e-2, atol=1e-2)), \
        float(jnp.max(jnp.abs(out - ref)))

    print("KERNEL_OK")
</pallas_src>

<mosaic_0001>
module attributes {stable_mosaic.version = 11 : i64} {
  func.func @_qlinear_kernel(%arg0: i32, %arg1: i32, %arg2: i32, %arg3: memref<16x1xf32, #tpu.memory_space<vmem>>, %arg4: memref<16x1024xbf16, #tpu.memory_space<vmem>>, %arg5: memref<1024x128xi8, #tpu.memory_space<vmem>>, %arg6: memref<1x8x128xf32, #tpu.memory_space<vmem>>, %arg7: memref<1x8x128xf32, #tpu.memory_space<vmem>>, %arg8: memref<1x128xf32, #tpu.memory_space<vmem>>, %arg9: memref<16x128xf32, #tpu.memory_space<vmem>>) attributes {dimension_semantics = [#tpu.dimension_semantics<parallel>, #tpu.dimension_semantics<parallel>, #tpu.dimension_semantics<arbitrary>], iteration_bounds = array<i64: 1, 2, 2>, scalar_prefetch = 0 : i64, scratch_operands = 0 : i64, tpu.core_type = #tpu.core_type<tc>, window_params = [{transform_indices = @transform_0, window_bounds = array<i64: 16, 1>}, {transform_indices = @transform_1, window_bounds = array<i64: 16, 1024>}, {transform_indices = @transform_2, window_bounds = array<i64: 1024, 128>}, {transform_indices = @transform_3, window_bounds = array<i64: 1, 8, 128>}, {transform_indices = @transform_4, window_bounds = array<i64: 1, 8, 128>}, {transform_indices = @transform_5, window_bounds = array<i64: 1, 128>}, {transform_indices = @transform_6, window_bounds = array<i64: 16, 128>}]} {
    %c0_i32 = arith.constant 0 : i32
    %0 = arith.cmpi eq, %arg2, %c0_i32 : i32
    %1 = arith.extui %0 : i1 to i32
    %c0_i32_0 = arith.constant 0 : i32
    %2 = arith.cmpi ne, %1, %c0_i32_0 : i32
    scf.if %2 {
      %cst_51 = arith.constant 0.000000e+00 : f32
      %154 = vector.broadcast %cst_51 : f32 to vector<16x128xf32>
      %c0_52 = arith.constant 0 : index
      %c0_53 = arith.constant 0 : index
      %155 = vector.load %arg9[%c0_52, %c0_53] : memref<16x128xf32, #tpu.memory_space<vmem>>, vector<16x128xf32>
      tpu.vector_store %arg9[%c0_52, %c0_53], %154 {strides = array<i32>} : memref<16x128xf32, #tpu.memory_space<vmem>>, vector<16x128xf32>,
    } else {
    }
    %c0 = arith.constant 0 : index
    %c0_1 = arith.constant 0 : index
    %c0_2 = arith.constant 0 : index
    %3 = vector.load %arg6[%c0, %c0_1, %c0_2] : memref<1x8x128xf32, #tpu.memory_space<vmem>>, vector<1x8x128xf32>
    %c0_3 = arith.constant 0 : index
    %c0_4 = arith.constant 0 : index
    %c0_5 = arith.constant 0 : index
    %4 = vector.load %arg7[%c0_3, %c0_4, %c0_5] : memref<1x8x128xf32, #tpu.memory_space<vmem>>, vector<1x8x128xf32>
    %c0_6 = arith.constant 0 : index
    %c0_7 = arith.constant 0 : index
    %5 = vector.load %arg9[%c0_6, %c0_7] : memref<16x128xf32, #tpu.memory_space<vmem>>, vector<16x128xf32>
    %c0_8 = arith.constant 0 : index
    %c0_9 = arith.constant 0 : index
    %6 = vector.load %arg4[%c0_8, %c0_9] : memref<16x1024xbf16, #tpu.memory_space<vmem>>, vector<16x128xbf16>
    %c0_10 = arith.constant 0 : index
    %c0_11 = arith.constant 0 : index
    %7 = vector.load %arg5[%c0_10, %c0_11] : memref<1024x128xi8, #tpu.memory_space<vmem>>, vector<128x128xi8>
    %8 = arith.sitofp %7 : vector<128x128xi8> to vector<128x128xbf16>
    %cst = arith.constant dense<0.000000e+00> : vector<16x128xf32>
    %9 = tpu.matmul %6, %8, %cst {dimension_numbers = #tpu.dot_dimension_numbers<[1], [0], [0], [1], [0, 0, 1, 1], [], []>} : vector<16x128xbf16>, vector<128x128xbf16>, vector<16x128xf32> -> vector<16x128xf32>
    %10 = arith.extf %6 : vector<16x128xbf16> to vector<16x128xf32>
    %cst_12 = arith.constant dense<0.000000e+00> : vector<16xf32>
    %11 = vector.multi_reduction <add>, %10, %cst_12 [1] : vector<16x128xf32> to vector<16xf32>
    %12 = vector.shape_cast %11 : vector<16xf32> to vector<16x1xf32>
    %13 = vector.extract_strided_slice %3 {offsets = [0, 0, 0], sizes = [1, 1, 128], strides = [1, 1, 1]} : vector<1x8x128xf32> to vector<1x1x128xf32>
    %14 = vector.shape_cast %13 : vector<1x1x128xf32> to vector<1x128xf32>
    %15 = vector.extract_strided_slice %4 {offsets = [0, 0, 0], sizes = [1, 1, 128], strides = [1, 1, 1]} : vector<1x8x128xf32> to vector<1x1x128xf32>
    %16 = vector.shape_cast %15 : vector<1x1x128xf32> to vector<1x128xf32>
    %17 = vector.broadcast %14 : vector<1x128xf32> to vector<16x128xf32>
    %18 = arith.mulf %9, %17 : vector<16x128xf32>
    %19 = arith.addf %5, %18 : vector<16x128xf32>
    %20 = vector.broadcast %12 : vector<16x1xf32> to vector<16x128xf32>
    %21 = vector.broadcast %16 : vector<1x128xf32> to vector<16x128xf32>
    %22 = arith.mulf %20, %21 : vector<16x128xf32>
    %23 = arith.subf %19, %22 : vector<16x128xf32>
    %c0_13 = arith.constant 0 : index
    %c128 = arith.constant 128 : index
    %24 = vector.load %arg4[%c0_13, %c128] : memref<16x1024xbf16, #tpu.memory_space<vmem>>, vector<16x128xbf16>
    %c128_14 = arith.constant 128 : index
    %c0_15 = arith.constant 0 : index
    %25 = vector.load %arg5[%c128_14, %c0_15] : memref<1024x128xi8, #tpu.memory_space<vmem>>, vector<128x128xi8>
    %26 = arith.sitofp %25 : vector<128x128xi8> to vector<128x128xbf16>
    %cst_16 = arith.constant dense<0.000000e+00> : vector<16x128xf32>
    %27 = tpu.matmul %24, %26, %cst_16 {dimension_numbers = #tpu.dot_dimension_numbers<[1], [0], [0], [1], [0, 0, 1, 1], [], []>} : vector<16x128xbf16>, vector<128x128xbf16>, vector<16x128xf32> -> vector<16x128xf32>
    %28 = arith.extf %24 : vector<16x128xbf16> to vector<16x128xf32>
    %cst_17 = arith.constant dense<0.000000e+00> : vector<16xf32>
    %29 = vector.multi_reduction <add>, %28, %cst_17 [1] : vector<16x128xf32> to vector<16xf32>
    %30 = vector.shape_cast %29 : vector<16xf32> to vector<16x1xf32>
    %31 = vector.extract_strided_slice %3 {offsets = [0, 1, 0], sizes = [1, 1, 128], strides = [1, 1, 1]} : vector<1x8x128xf32> to vector<1x1x128xf32>
    %32 = vector.shape_cast %31 : vector<1x1x128xf32> to vector<1x128xf32>
    %33 = vector.extract_strided_slice %4 {offsets = [0, 1, 0], sizes = [1, 1, 128], strides = [1, 1, 1]} : vector<1x8x128xf32> to vector<1x1x128xf32>
    %34 = vector.shape_cast %33 : vector<1x1x128xf32> to vector<1x128xf32>
    %35 = vector.broadcast %32 : vector<1x128xf32> to vector<16x128xf32>
    %36 = arith.mulf %27, %35 : vector<16x128xf32>
    %37 = arith.addf %23, %36 : vector<16x128xf32>
    %38 = vector.broadcast %30 : vector<16x1xf32> to vector<16x128xf32>
    %39 = vector.broadcast %34 : vector<1x128xf32> to vector<16x128xf32>
    %40 = arith.mulf %38, %39 : vector<16x128xf32>
    %41 = arith.subf %37, %40 : vector<16x128xf32>
    %c0_18 = arith.constant 0 : index
    %c256 = arith.constant 256 : index
    %42 = vector.load %arg4[%c0_18, %c256] : memref<16x1024xbf16, #tpu.memory_space<vmem>>, vector<16x128xbf16>
    %c256_19 = arith.constant 256 : index
    %c0_20 = arith.constant 0 : index
    %43 = vector.load %arg5[%c256_19, %c0_20] : memref<1024x128xi8, #tpu.memory_space<vmem>>, vector<128x128xi8>
    %44 = arith.sitofp %43 : vector<128x128xi8> to vector<128x128xbf16>
    %cst_21 = arith.constant dense<0.000000e+00> : vector<16x128xf32>
    %45 = tpu.matmul %42, %44, %cst_21 {dimension_numbers = #tpu.dot_dimension_numbers<[1], [0], [0], [1], [0, 0, 1, 1], [], []>} : vector<16x128xbf16>, vector<128x128xbf16>, vector<16x128xf32> -> vector<16x128xf32>
    %46 = arith.extf %42 : vector<16x128xbf16> to vector<16x128xf32>
    %cst_22 = arith.constant dense<0.000000e+00> : vector<16xf32>
    %47 = vector.multi_reduction <add>, %46, %cst_22 [1] : vector<16x128xf32> to vector<16xf32>
    %48 = vector.shape_cast %47 : vector<16xf32> to vector<16x1xf32>
    %49 = vector.extract_strided_slice %3 {offsets = [0, 2, 0], sizes = [1, 1, 128], strides = [1, 1, 1]} : vector<1x8x128xf32> to vector<1x1x128xf32>
    %50 = vector.shape_cast %49 : vector<1x1x128xf32> to vector<1x128xf32>
    %51 = vector.extract_strided_slice %4 {offsets = [0, 2, 0], sizes = [1, 1, 128], strides = [1, 1, 1]} : vector<1x8x128xf32> to vector<1x1x128xf32>
    %52 = vector.shape_cast %51 : vector<1x1x128xf32> to vector<1x128xf32>
    %53 = vector.broadcast %50 : vector<1x128xf32> to vector<16x128xf32>
    %54 = arith.mulf %45, %53 : vector<16x128xf32>
    %55 = arith.addf %41, %54 : vector<16x128xf32>
    %56 = vector.broadcast %48 : vector<16x1xf32> to vector<16x128xf32>
    %57 = vector.broadcast %52 : vector<1x128xf32> to vector<16x128xf32>
    %58 = arith.mulf %56, %57 : vector<16x128xf32>
    %59 = arith.subf %55, %58 : vector<16x128xf32>
    %c0_23 = arith.constant 0 : index
    %c384 = arith.constant 384 : index
    %60 = vector.load %arg4[%c0_23, %c384] : memref<16x1024xbf16, #tpu.memory_space<vmem>>, vector<16x128xbf16>
    %c384_24 = arith.constant 384 : index
    %c0_25 = arith.constant 0 : index
    %61 = vector.load %arg5[%c384_24, %c0_25] : memref<1024x128xi8, #tpu.memory_space<vmem>>, vector<128x128xi8>
    %62 = arith.sitofp %61 : vector<128x128xi8> to vector<128x128xbf16>
    %cst_26 = arith.constant dense<0.000000e+00> : vector<16x128xf32>
    %63 = tpu.matmul %60, %62, %cst_26 {dimension_numbers = #tpu.dot_dimension_numbers<[1], [0], [0], [1], [0, 0, 1, 1], [], []>} : vector<16x128xbf16>, vector<128x128xbf16>, vector<16x128xf32> -> vector<16x128xf32>
    %64 = arith.extf %60 : vector<16x128xbf16> to vector<16x128xf32>
    %cst_27 = arith.constant dense<0.000000e+00> : vector<16xf32>
    %65 = vector.multi_reduction <add>, %64, %cst_27 [1] : vector<16x128xf32> to vector<16xf32>
    %66 = vector.shape_cast %65 : vector<16xf32> to vector<16x1xf32>
    %67 = vector.extract_strided_slice %3 {offsets = [0, 3, 0], sizes = [1, 1, 128], strides = [1, 1, 1]} : vector<1x8x128xf32> to vector<1x1x128xf32>
    %68 = vector.shape_cast %67 : vector<1x1x128xf32> to vector<1x128xf32>
    %69 = vector.extract_strided_slice %4 {offsets = [0, 3, 0], sizes = [1, 1, 128], strides = [1, 1, 1]} : vector<1x8x128xf32> to vector<1x1x128xf32>
    %70 = vector.shape_cast %69 : vector<1x1x128xf32> to vector<1x128xf32>
    %71 = vector.broadcast %68 : vector<1x128xf32> to vector<16x128xf32>
    %72 = arith.mulf %63, %71 : vector<16x128xf32>
    %73 = arith.addf %59, %72 : vector<16x128xf32>
    %74 = vector.broadcast %66 : vector<16x1xf32> to vector<16x128xf32>
    %75 = vector.broadcast %70 : vector<1x128xf32> to vector<16x128xf32>
    %76 = arith.mulf %74, %75 : vector<16x128xf32>
    %77 = arith.subf %73, %76 : vector<16x128xf32>
    %c0_28 = arith.constant 0 : index
    %c512 = arith.constant 512 : index
    %78 = vector.load %arg4[%c0_28, %c512] : memref<16x1024xbf16, #tpu.memory_space<vmem>>, vector<16x128xbf16>
    %c512_29 = arith.constant 512 : index
    %c0_30 = arith.constant 0 : index
    %79 = vector.load %arg5[%c512_29, %c0_30] : memref<1024x128xi8, #tpu.memory_space<vmem>>, vector<128x128xi8>
    %80 = arith.sitofp %79 : vector<128x128xi8> to vector<128x128xbf16>
    %cst_31 = arith.constant dense<0.000000e+00> : vector<16x128xf32>
    %81 = tpu.matmul %78, %80, %cst_31 {dimension_numbers = #tpu.dot_dimension_numbers<[1], [0], [0], [1], [0, 0, 1, 1], [], []>} : vector<16x128xbf16>, vector<128x128xbf16>, vector<16x128xf32> -> vector<16x128xf32>
    %82 = arith.extf %78 : vector<16x128xbf16> to vector<16x128xf32>
    %cst_32 = arith.constant dense<0.000000e+00> : vector<16xf32>
    %83 = vector.multi_reduction <add>, %82, %cst_32 [1] : vector<16x128xf32> to vector<16xf32>
    %84 = vector.shape_cast %83 : vector<16xf32> to vector<16x1xf32>
    %85 = vector.extract_strided_slice %3 {offsets = [0, 4, 0], sizes = [1, 1, 128], strides = [1, 1, 1]} : vector<1x8x128xf32> to vector<1x1x128xf32>
    %86 = vector.shape_cast %85 : vector<1x1x128xf32> to vector<1x128xf32>
    %87 = vector.extract_strided_slice %4 {offsets = [0, 4, 0], sizes = [1, 1, 128], strides = [1, 1, 1]} : vector<1x8x128xf32> to vector<1x1x128xf32>
    %88 = vector.shape_cast %87 : vector<1x1x128xf32> to vector<1x128xf32>
    %89 = vector.broadcast %86 : vector<1x128xf32> to vector<16x128xf32>
    %90 = arith.mulf %81, %89 : vector<16x128xf32>
    %91 = arith.addf %77, %90 : vector<16x128xf32>
    %92 = vector.broadcast %84 : vector<16x1xf32> to vector<16x128xf32>
    %93 = vector.broadcast %88 : vector<1x128xf32> to vector<16x128xf32>
    %94 = arith.mulf %92, %93 : vector<16x128xf32>
    %95 = arith.subf %91, %94 : vector<16x128xf32>
    %c0_33 = arith.constant 0 : index
    %c640 = arith.constant 640 : index
    %96 = vector.load %arg4[%c0_33, %c640] : memref<16x1024xbf16, #tpu.memory_space<vmem>>, vector<16x128xbf16>
    %c640_34 = arith.constant 640 : index
    %c0_35 = arith.constant 0 : index
    %97 = vector.load %arg5[%c640_34, %c0_35] : memref<1024x128xi8, #tpu.memory_space<vmem>>, vector<128x128xi8>
    %98 = arith.sitofp %97 : vector<128x128xi8> to vector<128x128xbf16>
    %cst_36 = arith.constant dense<0.000000e+00> : vector<16x128xf32>
    %99 = tpu.matmul %96, %98, %cst_36 {dimension_numbers = #tpu.dot_dimension_numbers<[1], [0], [0], [1], [0, 0, 1, 1], [], []>} : vector<16x128xbf16>, vector<128x128xbf16>, vector<16x128xf32> -> vector<16x128xf32>
    %100 = arith.extf %96 : vector<16x128xbf16> to vector<16x128xf32>
    %cst_37 = arith.constant dense<0.000000e+00> : vector<16xf32>
    %101 = vector.multi_reduction <add>, %100, %cst_37 [1] : vector<16x128xf32> to vector<16xf32>
    %102 = vector.shape_cast %101 : vector<16xf32> to vector<16x1xf32>
    %103 = vector.extract_strided_slice %3 {offsets = [0, 5, 0], sizes = [1, 1, 128], strides = [1, 1, 1]} : vector<1x8x128xf32> to vector<1x1x128xf32>
    %104 = vector.shape_cast %103 : vector<1x1x128xf32> to vector<1x128xf32>
    %105 = vector.extract_strided_slice %4 {offsets = [0, 5, 0], sizes = [1, 1, 128], strides = [1, 1, 1]} : vector<1x8x128xf32> to vector<1x1x128xf32>
    %106 = vector.shape_cast %105 : vector<1x1x128xf32> to vector<1x128xf32>
    %107 = vector.broadcast %104 : vector<1x128xf32> to vector<16x128xf32>
    %108 = arith.mulf %99, %107 : vector<16x128xf32>
    %109 = arith.addf %95, %108 : vector<16x128xf32>
    %110 = vector.broadcast %102 : vector<16x1xf32> to vector<16x128xf32>
    %111 = vector.broadcast %106 : vector<1x128xf32> to vector<16x128xf32>
    %112 = arith.mulf %110, %111 : vector<16x128xf32>
    %113 = arith.subf %109, %112 : vector<16x128xf32>
    %c0_38 = arith.constant 0 : index
    %c768 = arith.constant 768 : index
    %114 = vector.load %arg4[%c0_38, %c768] : memref<16x1024xbf16, #tpu.memory_space<vmem>>, vector<16x128xbf16>
    %c768_39 = arith.constant 768 : index
    %c0_40 = arith.constant 0 : index
    %115 = vector.load %arg5[%c768_39, %c0_40] : memref<1024x128xi8, #tpu.memory_space<vmem>>, vector<128x128xi8>
    %116 = arith.sitofp %115 : vector<128x128xi8> to vector<128x128xbf16>
    %cst_41 = arith.constant dense<0.000000e+00> : vector<16x128xf32>
    %117 = tpu.matmul %114, %116, %cst_41 {dimension_numbers = #tpu.dot_dimension_numbers<[1], [0], [0], [1], [0, 0, 1, 1], [], []>} : vector<16x128xbf16>, vector<128x128xbf16>, vector<16x128xf32> -> vector<16x128xf32>
    %118 = arith.extf %114 : vector<16x128xbf16> to vector<16x128xf32>
    %cst_42 = arith.constant dense<0.000000e+00> : vector<16xf32>
    %119 = vector.multi_reduction <add>, %118, %cst_42 [1] : vector<16x128xf32> to vector<16xf32>
    %120 = vector.shape_cast %119 : vector<16xf32> to vector<16x1xf32>
    %121 = vector.extract_strided_slice %3 {offsets = [0, 6, 0], sizes = [1, 1, 128], strides = [1, 1, 1]} : vector<1x8x128xf32> to vector<1x1x128xf32>
    %122 = vector.shape_cast %121 : vector<1x1x128xf32> to vector<1x128xf32>
    %123 = vector.extract_strided_slice %4 {offsets = [0, 6, 0], sizes = [1, 1, 128], strides = [1, 1, 1]} : vector<1x8x128xf32> to vector<1x1x128xf32>
    %124 = vector.shape_cast %123 : vector<1x1x128xf32> to vector<1x128xf32>
    %125 = vector.broadcast %122 : vector<1x128xf32> to vector<16x128xf32>
    %126 = arith.mulf %117, %125 : vector<16x128xf32>
    %127 = arith.addf %113, %126 : vector<16x128xf32>
    %128 = vector.broadcast %120 : vector<16x1xf32> to vector<16x128xf32>
    %129 = vector.broadcast %124 : vector<1x128xf32> to vector<16x128xf32>
    %130 = arith.mulf %128, %129 : vector<16x128xf32>
    %131 = arith.subf %127, %130 : vector<16x128xf32>
    %c0_43 = arith.constant 0 : index
    %c896 = arith.constant 896 : index
    %132 = vector.load %arg4[%c0_43, %c896] : memref<16x1024xbf16, #tpu.memory_space<vmem>>, vector<16x128xbf16>
    %c896_44 = arith.constant 896 : index
    %c0_45 = arith.constant 0 : index
    %133 = vector.load %arg5[%c896_44, %c0_45] : memref<1024x128xi8, #tpu.memory_space<vmem>>, vector<128x128xi8>
    %134 = arith.sitofp %133 : vector<128x128xi8> to vector<128x128xbf16>
    %cst_46 = arith.constant dense<0.000000e+00> : vector<16x128xf32>
    %135 = tpu.matmul %132, %134, %cst_46 {dimension_numbers = #tpu.dot_dimension_numbers<[1], [0], [0], [1], [0, 0, 1, 1], [], []>} : vector<16x128xbf16>, vector<128x128xbf16>, vector<16x128xf32> -> vector<16x128xf32>
    %136 = arith.extf %132 : vector<16x128xbf16> to vector<16x128xf32>
    %cst_47 = arith.constant dense<0.000000e+00> : vector<16xf32>
    %137 = vector.multi_reduction <add>, %136, %cst_47 [1] : vector<16x128xf32> to vector<16xf32>
    %138 = vector.shape_cast %137 : vector<16xf32> to vector<16x1xf32>
    %139 = vector.extract_strided_slice %3 {offsets = [0, 7, 0], sizes = [1, 1, 128], strides = [1, 1, 1]} : vector<1x8x128xf32> to vector<1x1x128xf32>
    %140 = vector.shape_cast %139 : vector<1x1x128xf32> to vector<1x128xf32>
    %141 = vector.extract_strided_slice %4 {offsets = [0, 7, 0], sizes = [1, 1, 128], strides = [1, 1, 1]} : vector<1x8x128xf32> to vector<1x1x128xf32>
    %142 = vector.shape_cast %141 : vector<1x1x128xf32> to vector<1x128xf32>
    %143 = vector.broadcast %140 : vector<1x128xf32> to vector<16x128xf32>
    %144 = arith.mulf %135, %143 : vector<16x128xf32>
    %145 = arith.addf %131, %144 : vector<16x128xf32>
    %146 = vector.broadcast %138 : vector<16x1xf32> to vector<16x128xf32>
    %147 = vector.broadcast %142 : vector<1x128xf32> to vector<16x128xf32>
    %148 = arith.mulf %146, %147 : vector<16x128xf32>
    %149 = arith.subf %145, %148 : vector<16x128xf32>
    %c0_48 = arith.constant 0 : index
    %c0_49 = arith.constant 0 : index
    %150 = vector.load %arg9[%c0_48, %c0_49] : memref<16x128xf32, #tpu.memory_space<vmem>>, vector<16x128xf32>
    tpu.vector_store %arg9[%c0_48, %c0_49], %149 {strides = array<i32>} : memref<16x128xf32, #tpu.memory_space<vmem>>, vector<16x128xf32>,
    %c1_i32 = arith.constant 1 : i32
    %151 = arith.cmpi eq, %arg2, %c1_i32 : i32
    %152 = arith.extui %151 : i1 to i32
    %c0_i32_50 = arith.constant 0 : i32
    %153 = arith.cmpi ne, %152, %c0_i32_50 : i32
    scf.if %153 {
      %c0_51 = arith.constant 0 : index
      %c0_52 = arith.constant 0 : index
      %154 = vector.load %arg9[%c0_51, %c0_52] : memref<16x128xf32, #tpu.memory_space<vmem>>, vector<16x128xf32>
      %c0_53 = arith.constant 0 : index
      %c0_54 = arith.constant 0 : index
      %155 = vector.load %arg3[%c0_53, %c0_54] : memref<16x1xf32, #tpu.memory_space<vmem>>, vector<16x1xf32>
      %156 = vector.broadcast %155 : vector<16x1xf32> to vector<16x128xf32>
      %157 = arith.mulf %154, %156 : vector<16x128xf32>
      %c0_55 = arith.constant 0 : index
      %c0_56 = arith.constant 0 : index
      %158 = vector.load %arg8[%c0_55, %c0_56] : memref<1x128xf32, #tpu.memory_space<vmem>>, vector<1x128xf32>
      %159 = vector.broadcast %158 : vector<1x128xf32> to vector<16x128xf32>
      %160 = arith.addf %157, %159 : vector<16x128xf32>
      %c0_57 = arith.constant 0 : index
      %c0_58 = arith.constant 0 : index
      %161 = vector.load %arg9[%c0_57, %c0_58] : memref<16x128xf32, #tpu.memory_space<vmem>>, vector<16x128xf32>
      tpu.vector_store %arg9[%c0_57, %c0_58], %160 {strides = array<i32>} : memref<16x128xf32, #tpu.memory_space<vmem>>, vector<16x128xf32>,
    } else {
    }
    return
  }
  func.func @transform_0(%arg0: i32, %arg1: i32, %arg2: i32) -> (i32, i32) {
    %c0_i32 = arith.constant 0 : i32
    %c0_i32_0 = arith.constant 0 : i32
    return %arg0, %c0_i32 : i32, i32
  }
  func.func @transform_1(%arg0: i32, %arg1: i32, %arg2: i32) -> (i32, i32) {
    %c0_i32 = arith.constant 0 : i32
    return %arg0, %arg2 : i32, i32
  }
  func.func @transform_2(%arg0: i32, %arg1: i32, %arg2: i32) -> (i32, i32) {
    %c0_i32 = arith.constant 0 : i32
    return %arg2, %arg1 : i32, i32
  }
  func.func @transform_3(%arg0: i32, %arg1: i32, %arg2: i32) -> (i32, i32, i32) {
    %c0_i32 = arith.constant 0 : i32
    %c0_i32_0 = arith.constant 0 : i32
    return %arg2, %c0_i32, %arg1 : i32, i32, i32
  }
  func.func @transform_4(%arg0: i32, %arg1: i32, %arg2: i32) -> (i32, i32, i32) {
    %c0_i32 = arith.constant 0 : i32
    %c0_i32_0 = arith.constant 0 : i32
    return %arg2, %c0_i32, %arg1 : i32, i32, i32
  }
  func.func @transform_5(%arg0: i32, %arg1: i32, %arg2: i32) -> (i32, i32) {
    %c0_i32 = arith.constant 0 : i32
    %c0_i32_0 = arith.constant 0 : i32
    return %c0_i32, %arg1 : i32, i32
  }
  func.func @transform_6(%arg0: i32, %arg1: i32, %arg2: i32) -> (i32, i32) {
    %c0_i32 = arith.constant 0 : i32
    return %arg0, %arg1 : i32, i32
  }
}

</mosaic_0001>

<llo_original>
// kernel: tpu_custom_call.1
$region0: #{tpu_custom_call.1}
  #allocation0 [shape = 'u32[]', space=smem, size = 0x4, offset = 0x4, fixed_abs, tag = 'smem constant byte address 0x4 - core index']
  #allocation1 [shape = 'u32[144,128]{1,0:T(1,128)}', space=vmem, size = 0x12000, scoped, tag = 'internal scratch']
  %s0 = inlined_call_operand.vmem [shape: f32[16,1], index: 0, kind: input, shape index: {}]
  %s1 = inlined_call_operand.hbm [shape: bf16[16,2048], index: 1, kind: input, shape index: {}]
  %s2 = inlined_call_operand.hbm [shape: s8[2048,256], index: 2, kind: input, shape index: {}]
  %s3 = inlined_call_operand.hbm [shape: f32[2,8,256], index: 3, kind: input, shape index: {}]
  %s4 = inlined_call_operand.vmem [shape: f32[2,8,256], index: 4, kind: input, shape index: {}]
  %s5 = inlined_call_operand.vmem [shape: f32[1,256], index: 5, kind: input, shape index: {}]
  %s6 = inlined_call_operand.hbm [shape: f32[16,256], index: 6, kind: output, shape index: {}]
  %s7 = sld [smem:[#allocation0]]
  $region77: #{tpu_custom_call.1} parent=0
    _
  %s9 = ssub.s32 1, %s7
  %s10 = scalar_select 0, %s9, %s7
  $region1: #{tpu_custom_call.1} parent=0
    #allocation2 [shape = 'u8[65536]{0}', space=vmem, size = 0x10000, scoped, tag = 'input window, operand 1']
    #allocation3 [shape = 's32[2]{0}', space=sflag, size = 0x8, scoped, tag = 'scoped memory for tpu_custom_call.1']
    #allocation4 [shape = 's32[2]{0}', space=sflag, size = 0x8, scoped, tag = 'scoped memory for tpu_custom_call.1']
    #allocation5 [shape = 'u8[262144]{0}', space=vmem, size = 0x40000, scoped, tag = 'input window, operand 2']
    #allocation6 [shape = 's32[2]{0}', space=sflag, size = 0x8, scoped, tag = 'scoped memory for tpu_custom_call.1']
    #allocation7 [shape = 'u8[8192]{0}', space=vmem, size = 0x2000, scoped, tag = 'input window, operand 3']
    #allocation8 [shape = 'u8[16384]{0}', space=vmem, size = 0x4000, scoped, tag = 'output window, operand 0']
    %11 = vsyncpa [#allocation3], 0
    %s12 = scalar_lea.sflag [#allocation3], 1
    %13 = vsyncpa %s12, 0
    %14 = vsyncpa [#allocation6], 0
    %s15 = scalar_lea.sflag [#allocation6], 1
    %16 = vsyncpa %s15, 0
    %17 = vsyncpa [#allocation4], 0
    %s18 = scalar_lea.sflag [#allocation4], 1
    %19 = vsyncpa %s18, 0
    loop: start=0, step=1, limit=6
    $region2: #{tpu_custom_call.1} parent=1 // loop_pre_header
      _
    $region3: #{tpu_custom_call.1} parent=1 // loop_header
      %s21 = sphi 0, %s25
      %p22 = scmp.ge.s32.totalorder %s21, 6
      %s28 = sphi 0, %s47
      %s29 = sphi 0, %s43
      %s30 = sphi 0, %s39
      %s31 = sphi 0, %s28
      %s32 = sphi 0, %s29
      %s33 = sphi 0, %s30
      %s34 = sphi 0, %s31
      %s35 = sphi 0, %s32
      %s36 = sphi 0, %s33
      %s50 = sphi 0, %s52
      %s53 = sphi 0, %s50
      %s54 = sphi 0, %s53
      %s70 = sphi 0, %s54
      %s78 = sphi 0, %s80
      %s81 = sphi 0, %s78
      %s82 = sphi 0, %s81
      %s98 = sphi 0, %s82
      %s106 = sphi 0, %s108
      %s109 = sphi 0, %s106
      %s110 = sphi 0, %s109
      %s126 = sphi 0, %s110
      %s134 = sphi 0, %s136
      %s137 = sphi 0, %s134
      %s138 = sphi 0, %s137
      %s154 = sphi 0, %s138
      %s162 = sphi 0, %s164
      %s165 = sphi 0, %s162
      %s166 = sphi 0, %s165
      %s182 = sphi 0, %s166
      %s188 = sphi 0, %s190
      %s191 = sphi 0, %s188
      %s192 = sphi 0, %s191
      %s208 = sphi 0, %s192
      %s216 = sphi 0, %s218
      %s219 = sphi 0, %s216
      %s220 = sphi 0, %s219
      %s236 = sphi 0, %s220
    $region4: #{tpu_custom_call.1} parent=1 // loop_header_branch
      %24 = sbr.rel (%p22) target = $region8
    $region5: #{tpu_custom_call.1} parent=1 // loop_body
      %s26 = ssub.s32 %s21, 1
      %s27 = ssub.s32 %s21, 2
      %s37 = sadd.s32 1, %s30
      %p38 = scmp.ge.s32.totalorder %s37, 2
      %s39 = scalar_select %p38, 0, %s37
      %s40 = sadd.s32 1, %s29
      %s41 = scalar_select %p38, %s40, %s29
      %p42 = scmp.ge.s32.totalorder %s41, 2
      %s43 = scalar_select %p42, 0, %s41
      %s44 = sadd.s32 1, %s28
      %s45 = scalar_select %p42, %s44, %s28
      %p46 = scmp.ge.s32.totalorder %s45, 1
      %s47 = scalar_select %p46, 0, %s45
      %s48 = ssub.s32 %s28, %s47
      %p49 = scmp.eq.s32.totalorder %s48, 0
      %s51 = sadd.s32 %s50, 1
      %s52 = scalar_select %p49, %s50, %s51
      %p55 = pneg %p49
      %p56 = scmp.eq.s32.totalorder %s21, 3
      %p57 = por %p55, %p56
      %p58 = scmp.ne.s32.totalorder %s50, %s53
      %p59 = scmp.eq.s32.totalorder %s21, 0
      %p60 = por %p58, %p59
      %p61 = scmp.ne.s32.totalorder %s50, %s53
      %p62 = scmp.eq.s32.totalorder %s26, 3
      %p63 = por %p61, %p62
      %p64 = scmp.ne.s32.totalorder %s53, %s54
      %p65 = scmp.eq.s32.totalorder %s26, 0
      %p66 = por %p64, %p65
      %p67 = scmp.ne.s32.totalorder %s53, %s54
      %p68 = scmp.eq.s32.totalorder %s27, 3
      %p69 = por %p67, %p68
      %p71 = scmp.ne.s32.totalorder %s54, %s70
      %p72 = scmp.eq.s32.totalorder %s27, 0
      %p73 = por %p71, %p72
      %s74 = ssub.s32 %s28, %s47
      %s75 = ssub.s32 %s30, %s39
      %s76 = sor.u32 %s74, %s75
      %p77 = scmp.eq.s32.totalorder %s76, 0
      %s79 = sadd.s32 %s78, 1
      %s80 = scalar_select %p77, %s78, %s79
      %p83 = pneg %p77
      %p84 = scmp.eq.s32.totalorder %s21, 3
      %p85 = por %p83, %p84
      %p86 = scmp.ne.s32.totalorder %s78, %s81
      %p87 = scmp.eq.s32.totalorder %s21, 0
      %p88 = por %p86, %p87
      %p89 = scmp.ne.s32.totalorder %s78, %s81
      %p90 = scmp.eq.s32.totalorder %s26, 3
      %p91 = por %p89, %p90
      %p92 = scmp.ne.s32.totalorder %s81, %s82
      %p93 = scmp.eq.s32.totalorder %s26, 0
      %p94 = por %p92, %p93
      %p95 = scmp.ne.s32.totalorder %s81, %s82
      %p96 = scmp.eq.s32.totalorder %s27, 3
      %p97 = por %p95, %p96
      %p99 = scmp.ne.s32.totalorder %s82, %s98
      %p100 = scmp.eq.s32.totalorder %s27, 0
      %p101 = por %p99, %p100
      %s102 = ssub.s32 %s30, %s39
      %s103 = ssub.s32 %s29, %s43
      %s104 = sor.u32 %s102, %s103
      %p105 = scmp.eq.s32.totalorder %s104, 0
      %s107 = sadd.s32 %s106, 1
      %s108 = scalar_select %p105, %s106, %s107
      %p111 = pneg %p105
      %p112 = scmp.eq.s32.totalorder %s21, 3
      %p113 = por %p111, %p112
      %p114 = scmp.ne.s32.totalorder %s106, %s109
      %p115 = scmp.eq.s32.totalorder %s21, 0
      %p116 = por %p114, %p115
      %p117 = scmp.ne.s32.totalorder %s106, %s109
      %p118 = scmp.eq.s32.totalorder %s26, 3
      %p119 = por %p117, %p118
      %p120 = scmp.ne.s32.totalorder %s109, %s110
      %p121 = scmp.eq.s32.totalorder %s26, 0
      %p122 = por %p120, %p121
      %p123 = scmp.ne.s32.totalorder %s109, %s110
      %p124 = scmp.eq.s32.totalorder %s27, 3
      %p125 = por %p123, %p124
      %p127 = scmp.ne.s32.totalorder %s110, %s126
      %p128 = scmp.eq.s32.totalorder %s27, 0
      %p129 = por %p127, %p128
      %s130 = ssub.s32 %s30, %s39
      %s131 = ssub.s32 %s29, %s43
      %s132 = sor.u32 %s130, %s131
      %p133 = scmp.eq.s32.totalorder %s132, 0
      %s135 = sadd.s32 %s134, 1
      %s136 = scalar_select %p133, %s134, %s135
      %p139 = pneg %p133
      %p140 = scmp.eq.s32.totalorder %s21, 3
      %p141 = por %p139, %p140
      %p142 = scmp.ne.s32.totalorder %s134, %s137
      %p143 = scmp.eq.s32.totalorder %s21, 0
      %p144 = por %p142, %p143
      %p145 = scmp.ne.s32.totalorder %s134, %s137
      %p146 = scmp.eq.s32.totalorder %s26, 3
      %p147 = por %p145, %p146
      %p148 = scmp.ne.s32.totalorder %s137, %s138
      %p149 = scmp.eq.s32.totalorder %s26, 0
      %p150 = por %p148, %p149
      %p151 = scmp.ne.s32.totalorder %s137, %s138
      %p152 = scmp.eq.s32.totalorder %s27, 3
      %p153 = por %p151, %p152
      %p155 = scmp.ne.s32.totalorder %s138, %s154
      %p156 = scmp.eq.s32.totalorder %s27, 0
      %p157 = por %p155, %p156
      %s158 = ssub.s32 %s30, %s39
      %s159 = ssub.s32 %s29, %s43
      %s160 = sor.u32 %s158, %s159
      %p161 = scmp.eq.s32.totalorder %s160, 0
      %s163 = sadd.s32 %s162, 1
      %s164 = scalar_select %p161, %s162, %s163
      %p167 = pneg %p161
      %p168 = scmp.eq.s32.totalorder %s21, 3
      %p169 = por %p167, %p168
      %p170 = scmp.ne.s32.totalorder %s162, %s165
      %p171 = scmp.eq.s32.totalorder %s21, 0
      %p172 = por %p170, %p171
      %p173 = scmp.ne.s32.totalorder %s162, %s165
      %p174 = scmp.eq.s32.totalorder %s26, 3
      %p175 = por %p173, %p174
      %p176 = scmp.ne.s32.totalorder %s165, %s166
      %p177 = scmp.eq.s32.totalorder %s26, 0
      %p178 = por %p176, %p177
      %p179 = scmp.ne.s32.totalorder %s165, %s166
      %p180 = scmp.eq.s32.totalorder %s27, 3
      %p181 = por %p179, %p180
      %p183 = scmp.ne.s32.totalorder %s166, %s182
      %p184 = scmp.eq.s32.totalorder %s27, 0
      %p185 = por %p183, %p184
      %s186 = ssub.s32 %s29, %s43
      %p187 = scmp.eq.s32.totalorder %s186, 0
      %s189 = sadd.s32 %s188, 1
      %s190 = scalar_select %p187, %s188, %s189
      %p193 = pneg %p187
      %p194 = scmp.eq.s32.totalorder %s21, 3
      %p195 = por %p193, %p194
      %p196 = scmp.ne.s32.totalorder %s188, %s191
      %p197 = scmp.eq.s32.totalorder %s21, 0
      %p198 = por %p196, %p197
      %p199 = scmp.ne.s32.totalorder %s188, %s191
      %p200 = scmp.eq.s32.totalorder %s26, 3
      %p201 = por %p199, %p200
      %p202 = scmp.ne.s32.totalorder %s191, %s192
      %p203 = scmp.eq.s32.totalorder %s26, 0
      %p204 = por %p202, %p203
      %p205 = scmp.ne.s32.totalorder %s191, %s192
      %p206 = scmp.eq.s32.totalorder %s27, 3
      %p207 = por %p205, %p206
      %p209 = scmp.ne.s32.totalorder %s192, %s208
      %p210 = scmp.eq.s32.totalorder %s27, 0
      %p211 = por %p209, %p210
      %s212 = ssub.s32 %s28, %s47
      %s213 = ssub.s32 %s29, %s43
      %s214 = sor.u32 %s212, %s213
      %p215 = scmp.eq.s32.totalorder %s214, 0
      %s217 = sadd.s32 %s216, 1
      %s218 = scalar_select %p215, %s216, %s217
      %p221 = pneg %p215
      %p222 = scmp.eq.s32.totalorder %s21, 3
      %p223 = por %p221, %p222
      %p224 = scmp.ne.s32.totalorder %s216, %s219
      %p225 = scmp.eq.s32.totalorder %s21, 0
      %p226 = por %p224, %p225
      %p227 = scmp.ne.s32.totalorder %s216, %s219
      %p228 = scmp.eq.s32.totalorder %s26, 3
      %p229 = por %p227, %p228
      %p230 = scmp.ne.s32.totalorder %s219, %s220
      %p231 = scmp.eq.s32.totalorder %s26, 0
      %p232 = por %p230, %p231
      %p233 = scmp.ne.s32.totalorder %s219, %s220
      %p234 = scmp.eq.s32.totalorder %s27, 3
      %p235 = por %p233, %p234
      %p237 = scmp.ne.s32.totalorder %s220, %s236
      %p238 = scmp.eq.s32.totalorder %s27, 0
      %p239 = por %p237, %p238
      %p240 = scmp.le.s32.totalorder 1, %s21
      %p241 = scmp.lt.s32.totalorder %s21, 5
      %p242 = pnand %p240, %p241
      %p243 = pneg %p242
      // Predicated region
      $region9: #{tpu_custom_call.1} parent=5 // pred_check
        _
      $region10: #{tpu_custom_call.1} parent=5 // pred_check_branch
        %245 = sbr.rel (%p242) target = $region12
      $region11: #{tpu_custom_call.1} parent=5 // pred_region
        %s246 = ssub.s32 %s21, 1
        // Predicated region
        $region13: #{tpu_custom_call.1} parent=11 // pred_check
          %p247 = pneg %p66
        $region14: #{tpu_custom_call.1} parent=11 // pred_check_branch
          %249 = sbr.rel (%p247) target = $region16
        $region15: #{tpu_custom_call.1} parent=11 // pred_region
          %s250 = smul.u32 2, %s31
          %p251 = scmp.lt.s32.totalorder %s250, 1
          %s252 = scalar_select %p251, %s250, 1
          %s253 = smul.addr %s252, 8
          %s254 = scalar_lea.vmem %s0, %s253
          %s255 = smul.u32 2, %s31
        $region16: #{tpu_custom_call.1} parent=11 // pred_fallthru
          _
      $region12: #{tpu_custom_call.1} parent=5 // pred_fallthru
        _
      %p256 = scmp.lt.s32.totalorder %s21, 4
      // Predicated region
      $region17: #{tpu_custom_call.1} parent=5 // pred_check
        %p257 = pneg %p256
      $region18: #{tpu_custom_call.1} parent=5 // pred_check_branch
        %259 = sbr.rel (%p257) target = $region20
      $region19: #{tpu_custom_call.1} parent=5 // pred_region
        // Predicated region
        $region21: #{tpu_custom_call.1} parent=19 // pred_check
          %p260 = pneg %p88
        $region22: #{tpu_custom_call.1} parent=19 // pred_check_branch
          %262 = sbr.rel (%p260) target = $region24
        $region23: #{tpu_custom_call.1} parent=19 // pred_region
          %s263 = sand.u32 %s78, 1
          %s264 = scalar_lea.sflag [#allocation3], %s263
          %s265 = sand.u32 %s78, 1
          %s266 = smul.addr %s265, 64
          %s267 = scalar_lea.vmem [#allocation2], %s266
          %s268 = smul.u32 2, %s28
          %s269 = smul.u32 8, %s30
          %s271 = ssub.s32 1024, 1024
          %272 = vsyncadd %s264, %s271
          %s273 = smul.addr %s268, 16
          %s274 = sadd.s32 %s269, %s273
          %s275 = smul.addr %s274, 64
          %s276 = scalar_lea.hbm %s1, %s275
          %s277 = sshll.u32 %s267, 4
          %s278 = int_to_ptr.vmem [resolvable:$true] %s277
          %283 = dma.hbm_to_vmem [thread:$0]  %s276, 1024, %s278, %s264, 1024, 512, 32
        $region24: #{tpu_custom_call.1} parent=19 // pred_fallthru
          _
        // Predicated region
        $region25: #{tpu_custom_call.1} parent=19 // pred_check
          %p284 = pneg %p116
        $region26: #{tpu_custom_call.1} parent=19 // pred_check_branch
          %286 = sbr.rel (%p284) target = $region28
        $region27: #{tpu_custom_call.1} parent=19 // pred_region
          %s287 = sand.u32 %s21, 1
          %s288 = scalar_lea.sflag [#allocation6], %s287
          %s289 = sand.u32 %s106, 1
          %s290 = smul.addr %s289, 256
          %s291 = scalar_lea.vmem [#allocation5], %s290
          %s292 = smul.u32 32, %s30
          %s294 = ssub.s32 4096, 4096
          %295 = vsyncadd %s288, %s294
          %s296 = smul.addr %s292, 2
          %s297 = sadd.s32 %s29, %s296
          %s298 = smul.addr %s297, 128
          %s299 = scalar_lea.hbm %s2, %s298
          %s300 = sshll.u32 %s291, 4
          %s301 = int_to_ptr.vmem [resolvable:$true] %s300
          %306 = dma.hbm_to_vmem [thread:$0]  %s299, 4096, %s301, %s288, 256, 128, 8
        $region28: #{tpu_custom_call.1} parent=19 // pred_fallthru
          _
        // Predicated region
        $region29: #{tpu_custom_call.1} parent=19 // pred_check
          %p307 = pneg %p144
        $region30: #{tpu_custom_call.1} parent=19 // pred_check_branch
          %309 = sbr.rel (%p307) target = $region32
        $region31: #{tpu_custom_call.1} parent=19 // pred_region
          %s310 = sand.u32 %s21, 1
          %s311 = scalar_lea.sflag [#allocation6], %s310
          %s312 = sand.u32 %s134, 1
          %s313 = smul.addr %s312, 8
          %s314 = scalar_lea.vmem [#allocation7], %s313
          %s316 = ssub.s32 128, 128
          %317 = vsyncadd %s311, %s316
          %s318 = smul.addr %s30, 2
          %s319 = sadd.s32 %s29, %s318
          %s320 = smul.addr %s319, 128
          %s321 = scalar_lea.hbm %s3, %s320
          %s323 = sshll.u32 %s314, 4
          %s324 = int_to_ptr.vmem [resolvable:$true] %s323
          %326 = dma.hbm_to_vmem [thread:$0]  %s321, 128, %s324, %s311
        $region32: #{tpu_custom_call.1} parent=19 // pred_fallthru
          _
        // Predicated region
        $region33: #{tpu_custom_call.1} parent=19 // pred_check
          %p327 = pneg %p172
        $region34: #{tpu_custom_call.1} parent=19 // pred_check_branch
          %329 = sbr.rel (%p327) target = $region36
        $region35: #{tpu_custom_call.1} parent=19 // pred_region
          %p330 = scmp.lt.s32.totalorder %s30, 1
          %s331 = scalar_select %p330, %s30, 1
          %p332 = scmp.lt.s32.totalorder %s29, 1
          %s333 = scalar_select %p332, %s29, 1
          %s334 = smul.addr %s331, 2
          %s335 = sadd.s32 %s333, %s334
          %s336 = smul.addr %s335, 8
          %s337 = scalar_lea.vmem %s4, %s336
        $region36: #{tpu_custom_call.1} parent=19 // pred_fallthru
          _
        // Predicated region
        $region37: #{tpu_custom_call.1} parent=19 // pred_check
          %p338 = pneg %p198
        $region38: #{tpu_custom_call.1} parent=19 // pred_check_branch
          %340 = sbr.rel (%p338) target = $region40
        $region39: #{tpu_custom_call.1} parent=19 // pred_region
          %p341 = scmp.lt.s32.totalorder %s29, 1
          %s342 = scalar_select %p341, %s29, 1
          %s343 = scalar_lea.vmem %s5, %s342
        $region40: #{tpu_custom_call.1} parent=19 // pred_fallthru
          _
      $region20: #{tpu_custom_call.1} parent=5 // pred_fallthru
        _
      %p344 = scmp.le.s32.totalorder 1, %s21
      %p345 = scmp.lt.s32.totalorder %s21, 5
      %p346 = pnand %p344, %p345
      %p347 = pneg %p346
      // Predicated region
      $region41: #{tpu_custom_call.1} parent=5 // pred_check
        _
      $region42: #{tpu_custom_call.1} parent=5 // pred_check_branch
        %349 = sbr.rel (%p346) target = $region44
      $region43: #{tpu_custom_call.1} parent=5 // pred_region
        %s350 = ssub.s32 %s21, 1
        %s351 = sand.u32 %s81, 1
        %s352 = scalar_lea.sflag [#allocation3], %s351
        %s353 = sand.u32 %s81, 1
        %s354 = smul.addr %s353, 64
        %s355 = scalar_lea.vmem [#allocation2], %s354
        // Predicated region
        $region45: #{tpu_custom_call.1} parent=43 // pred_check
          %p356 = pneg %p94
        $region46: #{tpu_custom_call.1} parent=43 // pred_check_branch
          %358 = sbr.rel (%p356) target = $region48
        $region47: #{tpu_custom_call.1} parent=43 // pred_region
          %359 = dma.done %s352, 1024
        $region48: #{tpu_custom_call.1} parent=43 // pred_fallthru
          _
        %s360 = sand.u32 %s26, 1
        %s361 = scalar_lea.sflag [#allocation6], %s360
        %s362 = sand.u32 %s109, 1
        %s363 = smul.addr %s362, 256
        %s364 = scalar_lea.vmem [#allocation5], %s363
        // Predicated region
        $region49: #{tpu_custom_call.1} parent=43 // pred_check
          %p365 = pneg %p122
        $region50: #{tpu_custom_call.1} parent=43 // pred_check_branch
          %367 = sbr.rel (%p365) target = $region52
        $region51: #{tpu_custom_call.1} parent=43 // pred_region
          %368 = dma.done %s361, 4096
        $region52: #{tpu_custom_call.1} parent=43 // pred_fallthru
          _
        %s369 = sand.u32 %s26, 1
        %s370 = scalar_lea.sflag [#allocation6], %s369
        %s371 = sand.u32 %s137, 1
        %s372 = smul.addr %s371, 8
        %s373 = scalar_lea.vmem [#allocation7], %s372
        // Predicated region
        $region53: #{tpu_custom_call.1} parent=43 // pred_check
          %p374 = pneg %p150
        $region54: #{tpu_custom_call.1} parent=43 // pred_check_branch
          %376 = sbr.rel (%p374) target = $region56
        $region55: #{tpu_custom_call.1} parent=43 // pred_region
          %377 = dma.done %s370, 128
        $region56: #{tpu_custom_call.1} parent=43 // pred_fallthru
          _
        %s378 = smul.u32 2, %s31
        %p379 = scmp.lt.s32.totalorder %s378, 1
        %s380 = scalar_select %p379, %s378, 1
        %s381 = smul.addr %s380, 8
        %s382 = scalar_lea.vmem %s0, %s381
        %p383 = pneg %p66
        %p384 = pneg %p63
        %s385 = sand.u32 %s81, 1
        %s386 = scalar_lea.sflag [#allocation3], %s385
        %s387 = sand.u32 %s81, 1
        %s388 = smul.addr %s387, 64
        %s389 = scalar_lea.vmem [#allocation2], %s388
        %p390 = pneg %p94
        %p391 = pneg %p91
        %s392 = sand.u32 %s26, 1
        %s393 = scalar_lea.sflag [#allocation6], %s392
        %s394 = sand.u32 %s109, 1
        %s395 = smul.addr %s394, 256
        %s396 = scalar_lea.vmem [#allocation5], %s395
        %p397 = pneg %p122
        %p398 = pneg %p119
        %s399 = sand.u32 %s26, 1
        %s400 = scalar_lea.sflag [#allocation6], %s399
        %s401 = sand.u32 %s137, 1
        %s402 = smul.addr %s401, 8
        %s403 = scalar_lea.vmem [#allocation7], %s402
        %p404 = pneg %p150
        %p405 = pneg %p147
        %p406 = scmp.lt.s32.totalorder %s33, 1
        %s407 = scalar_select %p406, %s33, 1
        %p408 = scmp.lt.s32.totalorder %s32, 1
        %s409 = scalar_select %p408, %s32, 1
        %s410 = smul.addr %s407, 2
        %s411 = sadd.s32 %s409, %s410
        %s412 = smul.addr %s411, 8
        %s413 = scalar_lea.vmem %s4, %s412
        %p414 = pneg %p178
        %p415 = pneg %p175
        %p416 = scmp.lt.s32.totalorder %s32, 1
        %s417 = scalar_select %p416, %s32, 1
        %s418 = scalar_lea.vmem %s5, %s417
        %p419 = pneg %p204
        %p420 = pneg %p201
        %p421 = pneg %p232
        %p422 = pneg %p229
        %s423 = sand.u32 %s219, 1
        %s424 = scalar_lea.sflag [#allocation4], %s423
        %s425 = sand.u32 %s219, 1
        %s426 = smul.addr %s425, 16
        %s427 = scalar_lea.vmem [#allocation8], %s426
        %s428 = smul.u32 2, %s31
        %p429 = scmp.lt.s32.totalorder %s428, 1
        %s430 = scalar_select %p429, %s428, 1
        %s431 = smul.addr %s430, 8
        %s432 = scalar_lea.vmem %s0, %s431
        %s433 = smul.u32 2, %s31
        %s434 = smul.u32 2, %s31
        %s435 = smul.u32 8, %s33
        %s436 = smul.u32 32, %s33
        %p437 = scmp.lt.s32.totalorder %s33, 1
        %s438 = scalar_select %p437, %s33, 1
        %p439 = scmp.lt.s32.totalorder %s32, 1
        %s440 = scalar_select %p439, %s32, 1
        %s441 = smul.addr %s438, 2
        %s442 = sadd.s32 %s440, %s441
        %s443 = smul.addr %s442, 8
        %s444 = scalar_lea.vmem %s4, %s443
        %p445 = scmp.lt.s32.totalorder %s32, 1
        %s446 = scalar_select %p445, %s32, 1
        %s447 = scalar_lea.vmem %s5, %s446
        %s448 = smul.u32 2, %s31
        %p450 = scmp.eq.s32.totalorder %s33, 0
        // Predicated region
        $region57: #{tpu_custom_call.1} parent=43 // pred_check
          %p451 = pneg %p450
        $region58: #{tpu_custom_call.1} parent=43 // pred_check_branch
          %453 = sbr.rel (%p451) target = $region60
        $region59: #{tpu_custom_call.1} parent=43 // pred_region
          %454 = vst [vmem:[%s427] sm:$0xff] 0.0
          %455 = vst [vmem:[%s427 + $0x8] sm:$0xff] 0.0
        $region60: #{tpu_custom_call.1} parent=43 // pred_fallthru
          _
        %v456 = vld [vmem:[%s373] sm:$0xff]
        %v457 = vld [vmem:[%s444] sm:$0xff]
        %v458 = vld [vmem:[%s427] sm:$0xff]
        %v459 = vld [vmem:[%s427 + $0x8] sm:$0xff]
        %v460 = vld [vmem:[%s355] sm:$0xf]
        %v461 = vld [vmem:[%s355 + $0x20] sm:$0xf]
        %v462 = vld [vmem:[%s364] sm:$0xff]
        %v463 = vld [vmem:[%s364 + $0x8] sm:$0xff]
        %v464 = vld [vmem:[%s364 + $0x10] sm:$0xff]
        %v465 = vld [vmem:[%s364 + $0x18] sm:$0xff]
        %v466 = vunpack.c.l.s8.bf16 %v462
        %v467 = vunpack.c.h.s8.bf16 %v462
        %v468 = vunpack.c.l.s8.bf16 %v463
        %v469 = vunpack.c.h.s8.bf16 %v463
        %v470 = vunpack.c.l.s8.bf16 %v464
        %v471 = vunpack.c.h.s8.bf16 %v464
        %v472 = vunpack.c.l.s8.bf16 %v465
        %v473 = vunpack.c.h.s8.bf16 %v465
        %v476 = vunpack.c.l.b16 %v460
        %v477 = vunpack.c.l.b16 %v461
        %v478 = vpack.c.b16 %v477, %v476
        %480 = vmatprep.subr.bf16.mxu0 0
        %481 = vmatpush1.bf16.msra.mxu0 %v466
        %482 = vmatprep.subr.bf16.mxu0 0
        %483 = vmatpush1.bf16.msra.mxu0 %v467
        %484 = vmatprep.subr.bf16.mxu0 0
        %485 = vmatpush1.bf16.msra.mxu0 %v468
        %486 = vmatprep.subr.bf16.mxu0 0
        %487 = vmatpush1.bf16.msra.mxu0 %v469
        %488 = vmatprep.subr.bf16.mxu0 0
        %489 = vmatpush1.bf16.msra.mxu0 %v470
        %490 = vmatprep.subr.bf16.mxu0 0
        %491 = vmatpush1.bf16.msra.mxu0 %v471
        %492 = vmatprep.subr.bf16.mxu0 0
        %493 = vmatpush1.bf16.msra.mxu0 %v472
        %494 = vmatprep.subr.bf16.mxu0 0
        %495 = vmatpush1.bf16.msra.mxu0 %v473
        %496 = vmatprep.subr.bf16.mxu0 0
        %497 = vmatpush1.bf16.msra.mxu0 0
        %498 = vmatprep.subr.bf16.mxu0 0
        %499 = vmatpush1.bf16.msra.mxu0 0
        %500 = vmatprep.subr.bf16.mxu0 0
        %501 = vmatpush1.bf16.msra.mxu0 0
        %502 = vmatprep.subr.bf16.mxu0 0
        %503 = vmatpush1.bf16.msra.mxu0 0
        %504 = vmatprep.subr.bf16.mxu0 0
        %505 = vmatpush1.bf16.msra.mxu0 0
        %506 = vmatprep.subr.bf16.mxu0 0
        %507 = vmatpush1.bf16.msra.mxu0 0
        %508 = vmatprep.subr.bf16.mxu0 0
        %509 = vmatpush1.bf16.msra.mxu0 0
        %510 = vmatprep.subr.bf16.mxu0 0
        %511 = vmatpush1.bf16.msra.mxu0 0
        %512 = vmatprep.mubr.bf16.mxu0 0
        %513 = vmatmul.mubr.bf16.gmra.mrb[0].mxu0 %v478
        %v514 = vpop.f32.mrb[0].mxu0
        %v515 = vadd.f32 0.0, %v514
        %v516 = vpop.f32.mrb[0].mxu0
        %v517 = vpop.f32.mrb[0].mxu0
        %v518 = vadd.f32 0.0, %v517
        %v519 = vpop.f32.mrb[0].mxu0
        %520 = vdwg.mxu0
        %v521 = vunpack.c.l.bf16 %v460
        %v522 = vunpack.c.l.bf16 %v461
        %523 = vadd.xlane.f32.xlu0 %v521
        %v524 = vpop.xlane.xlu0 %523
        %525 = vadd.xlane.f32.xlu0 %v522
        %v526 = vpop.xlane.xlu0 %525
        %v527 = vlaneseq
        %v528 = vshrl.u32 %v527, 7
        %v529 = vsub.s32 0, %v528
        %v530 = vrot.slane %v456, %v529
        %v531 = vmul.f32 %v515, %v530
        %v532 = vmul.f32 %v518, %v530
        %v533 = vadd.f32 %v458, %v531
        %v534 = vadd.f32 %v459, %v532
        %v535 = vlaneseq
        %v536 = vshrl.u32 %v535, 7
        %v537 = vsub.s32 0, %v536
        %v538 = vrot.slane %v457, %v537
        %v539 = vmul.f32 %v524, %v538
        %v540 = vmul.f32 %v526, %v538
        %v541 = vsub.f32 %v533, %v539
        %v542 = vsub.f32 %v534, %v540
        %v543 = vld [vmem:[%s355 + $0x4] sm:$0xf]
        %v544 = vld [vmem:[%s355 + $0x24] sm:$0xf]
        %v545 = vld [vmem:[%s364 + $0x20] sm:$0xff]
        %v546 = vld [vmem:[%s364 + $0x28] sm:$0xff]
        %v547 = vld [vmem:[%s364 + $0x30] sm:$0xff]
        %v548 = vld [vmem:[%s364 + $0x38] sm:$0xff]
        %v549 = vunpack.c.l.s8.bf16 %v545
        %v550 = vunpack.c.h.s8.bf16 %v545
        %v551 = vunpack.c.l.s8.bf16 %v546
        %v552 = vunpack.c.h.s8.bf16 %v546
        %v553 = vunpack.c.l.s8.bf16 %v547
        %v554 = vunpack.c.h.s8.bf16 %v547
        %v555 = vunpack.c.l.s8.bf16 %v548
        %v556 = vunpack.c.h.s8.bf16 %v548
        %v559 = vunpack.c.l.b16 %v543
        %v560 = vunpack.c.l.b16 %v544
        %v561 = vpack.c.b16 %v560, %v559
        %563 = vmatprep.subr.bf16.mxu0 0
        %564 = vmatpush1.bf16.msra.mxu0 %v549
        %565 = vmatprep.subr.bf16.mxu0 0
        %566 = vmatpush1.bf16.msra.mxu0 %v550
        %567 = vmatprep.subr.bf16.mxu0 0
        %568 = vmatpush1.bf16.msra.mxu0 %v551
        %569 = vmatprep.subr.bf16.mxu0 0
        %570 = vmatpush1.bf16.msra.mxu0 %v552
        %571 = vmatprep.subr.bf16.mxu0 0
        %572 = vmatpush1.bf16.msra.mxu0 %v553
        %573 = vmatprep.subr.bf16.mxu0 0
        %574 = vmatpush1.bf16.msra.mxu0 %v554
        %575 = vmatprep.subr.bf16.mxu0 0
        %576 = vmatpush1.bf16.msra.mxu0 %v555
        %577 = vmatprep.subr.bf16.mxu0 0
        %578 = vmatpush1.bf16.msra.mxu0 %v556
        %579 = vmatprep.subr.bf16.mxu0 0
        %580 = vmatpush1.bf16.msra.mxu0 0
        %581 = vmatprep.subr.bf16.mxu0 0
        %582 = vmatpush1.bf16.msra.mxu0 0
        %583 = vmatprep.subr.bf16.mxu0 0
        %584 = vmatpush1.bf16.msra.mxu0 0
        %585 = vmatprep.subr.bf16.mxu0 0
        %586 = vmatpush1.bf16.msra.mxu0 0
        %587 = vmatprep.subr.bf16.mxu0 0
        %588 = vmatpush1.bf16.msra.mxu0 0
        %589 = vmatprep.subr.bf16.mxu0 0
        %590 = vmatpush1.bf16.msra.mxu0 0
        %591 = vmatprep.subr.bf16.mxu0 0
        %592 = vmatpush1.bf16.msra.mxu0 0
        %593 = vmatprep.subr.bf16.mxu0 0
        %594 = vmatpush1.bf16.msra.mxu0 0
        %595 = vmatprep.mubr.bf16.mxu0 0
        %596 = vmatmul.mubr.bf16.gmra.mrb[0].mxu0 %v561
        %v597 = vpop.f32.mrb[0].mxu0
        %v598 = vadd.f32 0.0, %v597
        %v599 = vpop.f32.mrb[0].mxu0
        %v600 = vpop.f32.mrb[0].mxu0
        %v601 = vadd.f32 0.0, %v600
        %v602 = vpop.f32.mrb[0].mxu0
        %603 = vdwg.mxu0
        %v604 = vunpack.c.l.bf16 %v543
        %v605 = vunpack.c.l.bf16 %v544
        %606 = vadd.xlane.f32.xlu0 %v604
        %v607 = vpop.xlane.xlu0 %606
        %608 = vadd.xlane.f32.xlu0 %v605
        %v609 = vpop.xlane.xlu0 %608
        %v610 = vlaneseq
        %v611 = vshrl.u32 %v610, 7
        %v612 = vsub.s32 1, %v611
        %v613 = vrot.slane %v456, %v612
        %v614 = vmul.f32 %v598, %v613
        %v615 = vmul.f32 %v601, %v613
        %v616 = vadd.f32 %v541, %v614
        %v617 = vadd.f32 %v542, %v615
        %v618 = vlaneseq
        %v619 = vshrl.u32 %v618, 7
        %v620 = vsub.s32 1, %v619
        %v621 = vrot.slane %v457, %v620
        %v622 = vmul.f32 %v607, %v621
        %v623 = vmul.f32 %v609, %v621
        %v624 = vsub.f32 %v616, %v622
        %v625 = vsub.f32 %v617, %v623
        %v626 = vld [vmem:[%s355 + $0x8] sm:$0xf]
        %v627 = vld [vmem:[%s355 + $0x28] sm:$0xf]
        %v628 = vld [vmem:[%s364 + $0x40] sm:$0xff]
        %v629 = vld [vmem:[%s364 + $0x48] sm:$0xff]
        %v630 = vld [vmem:[%s364 + $0x50] sm:$0xff]
        %v631 = vld [vmem:[%s364 + $0x58] sm:$0xff]
        %v632 = vunpack.c.l.s8.bf16 %v628
        %v633 = vunpack.c.h.s8.bf16 %v628
        %v634 = vunpack.c.l.s8.bf16 %v629
        %v635 = vunpack.c.h.s8.bf16 %v629
        %v636 = vunpack.c.l.s8.bf16 %v630
        %v637 = vunpack.c.h.s8.bf16 %v630
        %v638 = vunpack.c.l.s8.bf16 %v631
        %v639 = vunpack.c.h.s8.bf16 %v631
        %v642 = vunpack.c.l.b16 %v626
        %v643 = vunpack.c.l.b16 %v627
        %v644 = vpack.c.b16 %v643, %v642
        %646 = vmatprep.subr.bf16.mxu0 0
        %647 = vmatpush1.bf16.msra.mxu0 %v632
        %648 = vmatprep.subr.bf16.mxu0 0
        %649 = vmatpush1.bf16.msra.mxu0 %v633
        %650 = vmatprep.subr.bf16.mxu0 0
        %651 = vmatpush1.bf16.msra.mxu0 %v634
        %652 = vmatprep.subr.bf16.mxu0 0
        %653 = vmatpush1.bf16.msra.mxu0 %v635
        %654 = vmatprep.subr.bf16.mxu0 0
        %655 = vmatpush1.bf16.msra.mxu0 %v636
        %656 = vmatprep.subr.bf16.mxu0 0
        %657 = vmatpush1.bf16.msra.mxu0 %v637
        %658 = vmatprep.subr.bf16.mxu0 0
        %659 = vmatpush1.bf16.msra.mxu0 %v638
        %660 = vmatprep.subr.bf16.mxu0 0
        %661 = vmatpush1.bf16.msra.mxu0 %v639
        %662 = vmatprep.subr.bf16.mxu0 0
        %663 = vmatpush1.bf16.msra.mxu0 0
        %664 = vmatprep.subr.bf16.mxu0 0
        %665 = vmatpush1.bf16.msra.mxu0 0
        %666 = vmatprep.subr.bf16.mxu0 0
        %667 = vmatpush1.bf16.msra.mxu0 0
        %668 = vmatprep.subr.bf16.mxu0 0
        %669 = vmatpush1.bf16.msra.mxu0 0
        %670 = vmatprep.subr.bf16.mxu0 0
        %671 = vmatpush1.bf16.msra.mxu0 0
        %672 = vmatprep.subr.bf16.mxu0 0
        %673 = vmatpush1.bf16.msra.mxu0 0
        %674 = vmatprep.subr.bf16.mxu0 0
        %675 = vmatpush1.bf16.msra.mxu0 0
        %676 = vmatprep.subr.bf16.mxu0 0
        %677 = vmatpush1.bf16.msra.mxu0 0
        %678 = vmatprep.mubr.bf16.mxu0 0
        %679 = vmatmul.mubr.bf16.gmra.mrb[0].mxu0 %v644
        %v680 = vpop.f32.mrb[0].mxu0
        %v681 = vadd.f32 0.0, %v680
        %v682 = vpop.f32.mrb[0].mxu0
        %v683 = vpop.f32.mrb[0].mxu0
        %v684 = vadd.f32 0.0, %v683
        %v685 = vpop.f32.mrb[0].mxu0
        %686 = vdwg.mxu0
        %v687 = vunpack.c.l.bf16 %v626
        %v688 = vunpack.c.l.bf16 %v627
        %689 = vadd.xlane.f32.xlu0 %v687
        %v690 = vpop.xlane.xlu0 %689
        %691 = vadd.xlane.f32.xlu0 %v688
        %v692 = vpop.xlane.xlu0 %691
        %v693 = vlaneseq
        %v694 = vshrl.u32 %v693, 7
        %v695 = vsub.s32 2, %v694
        %v696 = vrot.slane %v456, %v695
        %v697 = vmul.f32 %v681, %v696
        %v698 = vmul.f32 %v684, %v696
        %v699 = vadd.f32 %v624, %v697
        %v700 = vadd.f32 %v625, %v698
        %v701 = vlaneseq
        %v702 = vshrl.u32 %v701, 7
        %v703 = vsub.s32 2, %v702
        %v704 = vrot.slane %v457, %v703
        %v705 = vmul.f32 %v690, %v704
        %v706 = vmul.f32 %v692, %v704
        %v707 = vsub.f32 %v699, %v705
        %v708 = vsub.f32 %v700, %v706
        %v709 = vld [vmem:[%s355 + $0xc] sm:$0xf]
        %v710 = vld [vmem:[%s355 + $0x2c] sm:$0xf]
        %v711 = vld [vmem:[%s364 + $0x60] sm:$0xff]
        %v712 = vld [vmem:[%s364 + $0x68] sm:$0xff]
        %v713 = vld [vmem:[%s364 + $0x70] sm:$0xff]
        %v714 = vld [vmem:[%s364 + $0x78] sm:$0xff]
        %v715 = vunpack.c.l.s8.bf16 %v711
        %v716 = vunpack.c.h.s8.bf16 %v711
        %v717 = vunpack.c.l.s8.bf16 %v712
        %v718 = vunpack.c.h.s8.bf16 %v712
        %v719 = vunpack.c.l.s8.bf16 %v713
        %v720 = vunpack.c.h.s8.bf16 %v713
        %v721 = vunpack.c.l.s8.bf16 %v714
        %v722 = vunpack.c.h.s8.bf16 %v714
        %v725 = vunpack.c.l.b16 %v709
        %v726 = vunpack.c.l.b16 %v710
        %v727 = vpack.c.b16 %v726, %v725
        %729 = vmatprep.subr.bf16.mxu0 0
        %730 = vmatpush1.bf16.msra.mxu0 %v715
        %731 = vmatprep.subr.bf16.mxu0 0
        %732 = vmatpush1.bf16.msra.mxu0 %v716
        %733 = vmatprep.subr.bf16.mxu0 0
        %734 = vmatpush1.bf16.msra.mxu0 %v717
        %735 = vmatprep.subr.bf16.mxu0 0
        %736 = vmatpush1.bf16.msra.mxu0 %v718
        %737 = vmatprep.subr.bf16.mxu0 0
        %738 = vmatpush1.bf16.msra.mxu0 %v719
        %739 = vmatprep.subr.bf16.mxu0 0
        %740 = vmatpush1.bf16.msra.mxu0 %v720
        %741 = vmatprep.subr.bf16.mxu0 0
        %742 = vmatpush1.bf16.msra.mxu0 %v721
        %743 = vmatprep.subr.bf16.mxu0 0
        %744 = vmatpush1.bf16.msra.mxu0 %v722
        %745 = vmatprep.subr.bf16.mxu0 0
        %746 = vmatpush1.bf16.msra.mxu0 0
        %747 = vmatprep.subr.bf16.mxu0 0
        %748 = vmatpush1.bf16.msra.mxu0 0
        %749 = vmatprep.subr.bf16.mxu0 0
        %750 = vmatpush1.bf16.msra.mxu0 0
        %751 = vmatprep.subr.bf16.mxu0 0
        %752 = vmatpush1.bf16.msra.mxu0 0
        %753 = vmatprep.subr.bf16.mxu0 0
        %754 = vmatpush1.bf16.msra.mxu0 0
        %755 = vmatprep.subr.bf16.mxu0 0
        %756 = vmatpush1.bf16.msra.mxu0 0
        %757 = vmatprep.subr.bf16.mxu0 0
        %758 = vmatpush1.bf16.msra.mxu0 0
        %759 = vmatprep.subr.bf16.mxu0 0
        %760 = vmatpush1.bf16.msra.mxu0 0
        %761 = vmatprep.mubr.bf16.mxu0 0
        %762 = vmatmul.mubr.bf16.gmra.mrb[0].mxu0 %v727
        %v763 = vpop.f32.mrb[0].mxu0
        %v764 = vadd.f32 0.0, %v763
        %v765 = vpop.f32.mrb[0].mxu0
        %v766 = vpop.f32.mrb[0].mxu0
        %v767 = vadd.f32 0.0, %v766
        %v768 = vpop.f32.mrb[0].mxu0
        %769 = vdwg.mxu0
        %v770 = vunpack.c.l.bf16 %v709
        %v771 = vunpack.c.l.bf16 %v710
        %772 = vadd.xlane.f32.xlu0 %v770
        %v773 = vpop.xlane.xlu0 %772
        %774 = vadd.xlane.f32.xlu0 %v771
        %v775 = vpop.xlane.xlu0 %774
        %v776 = vlaneseq
        %v777 = vshrl.u32 %v776, 7
        %v778 = vsub.s32 3, %v777
        %v779 = vrot.slane %v456, %v778
        %v780 = vmul.f32 %v764, %v779
        %v781 = vmul.f32 %v767, %v779
        %v782 = vadd.f32 %v707, %v780
        %v783 = vadd.f32 %v708, %v781
        %v784 = vlaneseq
        %v785 = vshrl.u32 %v784, 7
        %v786 = vsub.s32 3, %v785
        %v787 = vrot.slane %v457, %v786
        %v788 = vmul.f32 %v773, %v787
        %v789 = vmul.f32 %v775, %v787
        %v790 = vsub.f32 %v782, %v788
        %v791 = vsub.f32 %v783, %v789
        %v792 = vld [vmem:[%s355 + $0x10] sm:$0xf]
        %v793 = vld [vmem:[%s355 + $0x30] sm:$0xf]
        %v794 = vld [vmem:[%s364 + $0x80] sm:$0xff]
        %v795 = vld [vmem:[%s364 + $0x88] sm:$0xff]
        %v796 = vld [vmem:[%s364 + $0x90] sm:$0xff]
        %v797 = vld [vmem:[%s364 + $0x98] sm:$0xff]
        %v798 = vunpack.c.l.s8.bf16 %v794
        %v799 = vunpack.c.h.s8.bf16 %v794
        %v800 = vunpack.c.l.s8.bf16 %v795
        %v801 = vunpack.c.h.s8.bf16 %v795
        %v802 = vunpack.c.l.s8.bf16 %v796
        %v803 = vunpack.c.h.s8.bf16 %v796
        %v804 = vunpack.c.l.s8.bf16 %v797
        %v805 = vunpack.c.h.s8.bf16 %v797
        %v808 = vunpack.c.l.b16 %v792
        %v809 = vunpack.c.l.b16 %v793
        %v810 = vpack.c.b16 %v809, %v808
        %812 = vmatprep.subr.bf16.mxu0 0
        %813 = vmatpush1.bf16.msra.mxu0 %v798
        %814 = vmatprep.subr.bf16.mxu0 0
        %815 = vmatpush1.bf16.msra.mxu0 %v799
        %816 = vmatprep.subr.bf16.mxu0 0
        %817 = vmatpush1.bf16.msra.mxu0 %v800
        %818 = vmatprep.subr.bf16.mxu0 0
        %819 = vmatpush1.bf16.msra.mxu0 %v801
        %820 = vmatprep.subr.bf16.mxu0 0
        %821 = vmatpush1.bf16.msra.mxu0 %v802
        %822 = vmatprep.subr.bf16.mxu0 0
        %823 = vmatpush1.bf16.msra.mxu0 %v803
        %824 = vmatprep.subr.bf16.mxu0 0
        %825 = vmatpush1.bf16.msra.mxu0 %v804
        %826 = vmatprep.subr.bf16.mxu0 0
        %827 = vmatpush1.bf16.msra.mxu0 %v805
        %828 = vmatprep.subr.bf16.mxu0 0
        %829 = vmatpush1.bf16.msra.mxu0 0
        %830 = vmatprep.subr.bf16.mxu0 0
        %831 = vmatpush1.bf16.msra.mxu0 0
        %832 = vmatprep.subr.bf16.mxu0 0
        %833 = vmatpush1.bf16.msra.mxu0 0
        %834 = vmatprep.subr.bf16.mxu0 0
        %835 = vmatpush1.bf16.msra.mxu0 0
        %836 = vmatprep.subr.bf16.mxu0 0
        %837 = vmatpush1.bf16.msra.mxu0 0
        %838 = vmatprep.subr.bf16.mxu0 0
        %839 = vmatpush1.bf16.msra.mxu0 0
        %840 = vmatprep.subr.bf16.mxu0 0
        %841 = vmatpush1.bf16.msra.mxu0 0
        %842 = vmatprep.subr.bf16.mxu0 0
        %843 = vmatpush1.bf16.msra.mxu0 0
        %844 = vmatprep.mubr.bf16.mxu0 0
        %845 = vmatmul.mubr.bf16.gmra.mrb[0].mxu0 %v810
        %v846 = vpop.f32.mrb[0].mxu0
        %v847 = vadd.f32 0.0, %v846
        %v848 = vpop.f32.mrb[0].mxu0
        %v849 = vpop.f32.mrb[0].mxu0
        %v850 = vadd.f32 0.0, %v849
        %v851 = vpop.f32.mrb[0].mxu0
        %852 = vdwg.mxu0
        %v853 = vunpack.c.l.bf16 %v792
        %v854 = vunpack.c.l.bf16 %v793
        %855 = vadd.xlane.f32.xlu0 %v853
        %v856 = vpop.xlane.xlu0 %855
        %857 = vadd.xlane.f32.xlu0 %v854
        %v858 = vpop.xlane.xlu0 %857
        %v859 = vlaneseq
        %v860 = vshrl.u32 %v859, 7
        %v861 = vsub.s32 4, %v860
        %v862 = vrot.slane %v456, %v861
        %v863 = vmul.f32 %v847, %v862
        %v864 = vmul.f32 %v850, %v862
        %v865 = vadd.f32 %v790, %v863
        %v866 = vadd.f32 %v791, %v864
        %v867 = vlaneseq
        %v868 = vshrl.u32 %v867, 7
        %v869 = vsub.s32 4, %v868
        %v870 = vrot.slane %v457, %v869
        %v871 = vmul.f32 %v856, %v870
        %v872 = vmul.f32 %v858, %v870
        %v873 = vsub.f32 %v865, %v871
        %v874 = vsub.f32 %v866, %v872
        %v875 = vld [vmem:[%s355 + $0x14] sm:$0xf]
        %v876 = vld [vmem:[%s355 + $0x34] sm:$0xf]
        %v877 = vld [vmem:[%s364 + $0xa0] sm:$0xff]
        %v878 = vld [vmem:[%s364 + $0xa8] sm:$0xff]
        %v879 = vld [vmem:[%s364 + $0xb0] sm:$0xff]
        %v880 = vld [vmem:[%s364 + $0xb8] sm:$0xff]
        %v881 = vunpack.c.l.s8.bf16 %v877
        %v882 = vunpack.c.h.s8.bf16 %v877
        %v883 = vunpack.c.l.s8.bf16 %v878
        %v884 = vunpack.c.h.s8.bf16 %v878
        %v885 = vunpack.c.l.s8.bf16 %v879
        %v886 = vunpack.c.h.s8.bf16 %v879
        %v887 = vunpack.c.l.s8.bf16 %v880
        %v888 = vunpack.c.h.s8.bf16 %v880
        %v891 = vunpack.c.l.b16 %v875
        %v892 = vunpack.c.l.b16 %v876
        %v893 = vpack.c.b16 %v892, %v891
        %895 = vmatprep.subr.bf16.mxu0 0
        %896 = vmatpush1.bf16.msra.mxu0 %v881
        %897 = vmatprep.subr.bf16.mxu0 0
        %898 = vmatpush1.bf16.msra.mxu0 %v882
        %899 = vmatprep.subr.bf16.mxu0 0
        %900 = vmatpush1.bf16.msra.mxu0 %v883
        %901 = vmatprep.subr.bf16.mxu0 0
        %902 = vmatpush1.bf16.msra.mxu0 %v884
        %903 = vmatprep.subr.bf16.mxu0 0
        %904 = vmatpush1.bf16.msra.mxu0 %v885
        %905 = vmatprep.subr.bf16.mxu0 0
        %906 = vmatpush1.bf16.msra.mxu0 %v886
        %907 = vmatprep.subr.bf16.mxu0 0
        %908 = vmatpush1.bf16.msra.mxu0 %v887
        %909 = vmatprep.subr.bf16.mxu0 0
        %910 = vmatpush1.bf16.msra.mxu0 %v888
        %911 = vmatprep.subr.bf16.mxu0 0
        %912 = vmatpush1.bf16.msra.mxu0 0
        %913 = vmatprep.subr.bf16.mxu0 0
        %914 = vmatpush1.bf16.msra.mxu0 0
        %915 = vmatprep.subr.bf16.mxu0 0
        %916 = vmatpush1.bf16.msra.mxu0 0
        %917 = vmatprep.subr.bf16.mxu0 0
        %918 = vmatpush1.bf16.msra.mxu0 0
        %919 = vmatprep.subr.bf16.mxu0 0
        %920 = vmatpush1.bf16.msra.mxu0 0
        %921 = vmatprep.subr.bf16.mxu0 0
        %922 = vmatpush1.bf16.msra.mxu0 0
        %923 = vmatprep.subr.bf16.mxu0 0
        %924 = vmatpush1.bf16.msra.mxu0 0
        %925 = vmatprep.subr.bf16.mxu0 0
        %926 = vmatpush1.bf16.msra.mxu0 0
        %927 = vmatprep.mubr.bf16.mxu0 0
        %928 = vmatmul.mubr.bf16.gmra.mrb[0].mxu0 %v893
        %v929 = vpop.f32.mrb[0].mxu0
        %v930 = vadd.f32 0.0, %v929
        %v931 = vpop.f32.mrb[0].mxu0
        %v932 = vpop.f32.mrb[0].mxu0
        %v933 = vadd.f32 0.0, %v932
        %v934 = vpop.f32.mrb[0].mxu0
        %935 = vdwg.mxu0
        %v936 = vunpack.c.l.bf16 %v875
        %v937 = vunpack.c.l.bf16 %v876
        %938 = vadd.xlane.f32.xlu0 %v936
        %v939 = vpop.xlane.xlu0 %938
        %940 = vadd.xlane.f32.xlu0 %v937
        %v941 = vpop.xlane.xlu0 %940
        %v942 = vlaneseq
        %v943 = vshrl.u32 %v942, 7
        %v944 = vsub.s32 5, %v943
        %v945 = vrot.slane %v456, %v944
        %v946 = vmul.f32 %v930, %v945
        %v947 = vmul.f32 %v933, %v945
        %v948 = vadd.f32 %v873, %v946
        %v949 = vadd.f32 %v874, %v947
        %v950 = vlaneseq
        %v951 = vshrl.u32 %v950, 7
        %v952 = vsub.s32 5, %v951
        %v953 = vrot.slane %v457, %v952
        %v954 = vmul.f32 %v939, %v953
        %v955 = vmul.f32 %v941, %v953
        %v956 = vsub.f32 %v948, %v954
        %v957 = vsub.f32 %v949, %v955
        %v958 = vld [vmem:[%s355 + $0x18] sm:$0xf]
        %v959 = vld [vmem:[%s355 + $0x38] sm:$0xf]
        %v960 = vld [vmem:[%s364 + $0xc0] sm:$0xff]
        %v961 = vld [vmem:[%s364 + $0xc8] sm:$0xff]
        %v962 = vld [vmem:[%s364 + $0xd0] sm:$0xff]
        %v963 = vld [vmem:[%s364 + $0xd8] sm:$0xff]
        %v964 = vunpack.c.l.s8.bf16 %v960
        %v965 = vunpack.c.h.s8.bf16 %v960
        %v966 = vunpack.c.l.s8.bf16 %v961
        %v967 = vunpack.c.h.s8.bf16 %v961
        %v968 = vunpack.c.l.s8.bf16 %v962
        %v969 = vunpack.c.h.s8.bf16 %v962
        %v970 = vunpack.c.l.s8.bf16 %v963
        %v971 = vunpack.c.h.s8.bf16 %v963
        %v974 = vunpack.c.l.b16 %v958
        %v975 = vunpack.c.l.b16 %v959
        %v976 = vpack.c.b16 %v975, %v974
        %978 = vmatprep.subr.bf16.mxu0 0
        %979 = vmatpush1.bf16.msra.mxu0 %v964
        %980 = vmatprep.subr.bf16.mxu0 0
        %981 = vmatpush1.bf16.msra.mxu0 %v965
        %982 = vmatprep.subr.bf16.mxu0 0
        %983 = vmatpush1.bf16.msra.mxu0 %v966
        %984 = vmatprep.subr.bf16.mxu0 0
        %985 = vmatpush1.bf16.msra.mxu0 %v967
        %986 = vmatprep.subr.bf16.mxu0 0
        %987 = vmatpush1.bf16.msra.mxu0 %v968
        %988 = vmatprep.subr.bf16.mxu0 0
        %989 = vmatpush1.bf16.msra.mxu0 %v969
        %990 = vmatprep.subr.bf16.mxu0 0
        %991 = vmatpush1.bf16.msra.mxu0 %v970
        %992 = vmatprep.subr.bf16.mxu0 0
        %993 = vmatpush1.bf16.msra.mxu0 %v971
        %994 = vmatprep.subr.bf16.mxu0 0
        %995 = vmatpush1.bf16.msra.mxu0 0
        %996 = vmatprep.subr.bf16.mxu0 0
        %997 = vmatpush1.bf16.msra.mxu0 0
        %998 = vmatprep.subr.bf16.mxu0 0
        %999 = vmatpush1.bf16.msra.mxu0 0
        %1000 = vmatprep.subr.bf16.mxu0 0
        %1001 = vmatpush1.bf16.msra.mxu0 0
        %1002 = vmatprep.subr.bf16.mxu0 0
        %1003 = vmatpush1.bf16.msra.mxu0 0
        %1004 = vmatprep.subr.bf16.mxu0 0
        %1005 = vmatpush1.bf16.msra.mxu0 0
        %1006 = vmatprep.subr.bf16.mxu0 0
        %1007 = vmatpush1.bf16.msra.mxu0 0
        %1008 = vmatprep.subr.bf16.mxu0 0
        %1009 = vmatpush1.bf16.msra.mxu0 0
        %1010 = vmatprep.mubr.bf16.mxu0 0
        %1011 = vmatmul.mubr.bf16.gmra.mrb[0].mxu0 %v976
        %v1012 = vpop.f32.mrb[0].mxu0
        %v1013 = vadd.f32 0.0, %v1012
        %v1014 = vpop.f32.mrb[0].mxu0
        %v1015 = vpop.f32.mrb[0].mxu0
        %v1016 = vadd.f32 0.0, %v1015
        %v1017 = vpop.f32.mrb[0].mxu0
        %1018 = vdwg.mxu0
        %v1019 = vunpack.c.l.bf16 %v958
        %v1020 = vunpack.c.l.bf16 %v959
        %1021 = vadd.xlane.f32.xlu0 %v1019
        %v1022 = vpop.xlane.xlu0 %1021
        %1023 = vadd.xlane.f32.xlu0 %v1020
        %v1024 = vpop.xlane.xlu0 %1023
        %v1025 = vlaneseq
        %v1026 = vshrl.u32 %v1025, 7
        %v1027 = vsub.s32 6, %v1026
        %v1028 = vrot.slane %v456, %v1027
        %v1029 = vmul.f32 %v1013, %v1028
        %v1030 = vmul.f32 %v1016, %v1028
        %v1031 = vadd.f32 %v956, %v1029
        %v1032 = vadd.f32 %v957, %v1030
        %v1033 = vlaneseq
        %v1034 = vshrl.u32 %v1033, 7
        %v1035 = vsub.s32 6, %v1034
        %v1036 = vrot.slane %v457, %v1035
        %v1037 = vmul.f32 %v1022, %v1036
        %v1038 = vmul.f32 %v1024, %v1036
        %v1039 = vsub.f32 %v1031, %v1037
        %v1040 = vsub.f32 %v1032, %v1038
        %v1041 = vld [vmem:[%s355 + $0x1c] sm:$0xf]
        %v1042 = vld [vmem:[%s355 + $0x3c] sm:$0xf]
        %v1043 = vld [vmem:[%s364 + $0xe0] sm:$0xff]
        %v1044 = vld [vmem:[%s364 + $0xe8] sm:$0xff]
        %v1045 = vld [vmem:[%s364 + $0xf0] sm:$0xff]
        %v1046 = vld [vmem:[%s364 + $0xf8] sm:$0xff]
        %v1047 = vunpack.c.l.s8.bf16 %v1043
        %v1048 = vunpack.c.h.s8.bf16 %v1043
        %v1049 = vunpack.c.l.s8.bf16 %v1044
        %v1050 = vunpack.c.h.s8.bf16 %v1044
        %v1051 = vunpack.c.l.s8.bf16 %v1045
        %v1052 = vunpack.c.h.s8.bf16 %v1045
        %v1053 = vunpack.c.l.s8.bf16 %v1046
        %v1054 = vunpack.c.h.s8.bf16 %v1046
        %v1057 = vunpack.c.l.b16 %v1041
        %v1058 = vunpack.c.l.b16 %v1042
        %v1059 = vpack.c.b16 %v1058, %v1057
        %1061 = vmatprep.subr.bf16.mxu0 0
        %1062 = vmatpush1.bf16.msra.mxu0 %v1047
        %1063 = vmatprep.subr.bf16.mxu0 0
        %1064 = vmatpush1.bf16.msra.mxu0 %v1048
        %1065 = vmatprep.subr.bf16.mxu0 0
        %1066 = vmatpush1.bf16.msra.mxu0 %v1049
        %1067 = vmatprep.subr.bf16.mxu0 0
        %1068 = vmatpush1.bf16.msra.mxu0 %v1050
        %1069 = vmatprep.subr.bf16.mxu0 0
        %1070 = vmatpush1.bf16.msra.mxu0 %v1051
        %1071 = vmatprep.subr.bf16.mxu0 0
        %1072 = vmatpush1.bf16.msra.mxu0 %v1052
        %1073 = vmatprep.subr.bf16.mxu0 0
        %1074 = vmatpush1.bf16.msra.mxu0 %v1053
        %1075 = vmatprep.subr.bf16.mxu0 0
        %1076 = vmatpush1.bf16.msra.mxu0 %v1054
        %1077 = vmatprep.subr.bf16.mxu0 0
        %1078 = vmatpush1.bf16.msra.mxu0 0
        %1079 = vmatprep.subr.bf16.mxu0 0
        %1080 = vmatpush1.bf16.msra.mxu0 0
        %1081 = vmatprep.subr.bf16.mxu0 0
        %1082 = vmatpush1.bf16.msra.mxu0 0
        %1083 = vmatprep.subr.bf16.mxu0 0
        %1084 = vmatpush1.bf16.msra.mxu0 0
        %1085 = vmatprep.subr.bf16.mxu0 0
        %1086 = vmatpush1.bf16.msra.mxu0 0
        %1087 = vmatprep.subr.bf16.mxu0 0
        %1088 = vmatpush1.bf16.msra.mxu0 0
        %1089 = vmatprep.subr.bf16.mxu0 0
        %1090 = vmatpush1.bf16.msra.mxu0 0
        %1091 = vmatprep.subr.bf16.mxu0 0
        %1092 = vmatpush1.bf16.msra.mxu0 0
        %1093 = vmatprep.mubr.bf16.mxu0 0
        %1094 = vmatmul.mubr.bf16.gmra.mrb[0].mxu0 %v1059
        %v1095 = vpop.f32.mrb[0].mxu0
        %v1096 = vadd.f32 0.0, %v1095
        %v1097 = vpop.f32.mrb[0].mxu0
        %v1098 = vpop.f32.mrb[0].mxu0
        %v1099 = vadd.f32 0.0, %v1098
        %v1100 = vpop.f32.mrb[0].mxu0
        %1101 = vdwg.mxu0
        %v1102 = vunpack.c.l.bf16 %v1041
        %v1103 = vunpack.c.l.bf16 %v1042
        %1104 = vadd.xlane.f32.xlu0 %v1102
        %v1105 = vpop.xlane.xlu0 %1104
        %1106 = vadd.xlane.f32.xlu0 %v1103
        %v1107 = vpop.xlane.xlu0 %1106
        %v1108 = vlaneseq
        %v1109 = vshrl.u32 %v1108, 7
        %v1110 = vsub.s32 7, %v1109
        %v1111 = vrot.slane %v456, %v1110
        %v1112 = vmul.f32 %v1096, %v1111
        %v1113 = vmul.f32 %v1099, %v1111
        %v1114 = vadd.f32 %v1039, %v1112
        %v1115 = vadd.f32 %v1040, %v1113
        %v1116 = vlaneseq
        %v1117 = vshrl.u32 %v1116, 7
        %v1118 = vsub.s32 7, %v1117
        %v1119 = vrot.slane %v457, %v1118
        %v1120 = vmul.f32 %v1105, %v1119
        %v1121 = vmul.f32 %v1107, %v1119
        %v1122 = vsub.f32 %v1114, %v1120
        %v1123 = vsub.f32 %v1115, %v1121
        %1124 = vst [vmem:[%s427] sm:$0xff] %v1122
        %1125 = vst [vmem:[%s427 + $0x8] sm:$0xff] %v1123
        %p1126 = scmp.eq.s32.totalorder %s33, 1
        // Predicated region
        $region61: #{tpu_custom_call.1} parent=43 // pred_check
          %p1127 = pneg %p1126
        $region62: #{tpu_custom_call.1} parent=43 // pred_check_branch
          %1129 = sbr.rel (%p1127) target = $region64
        $region63: #{tpu_custom_call.1} parent=43 // pred_region
          %v1130 = vld [vmem:[%s427] sm:$0xff]
          %v1131 = vld [vmem:[%s427 + $0x8] sm:$0xff]
          %v1132 = vld [vmem:[%s432] sm:$0xff]
          %v1133 = vld [vmem:[%s432 + $0x8] sm:$0xff]
          %1135 = vset.pattern.permute.xlu0 0
          %1136 = vperm.xlu0 %1135, %v1132
          %v1137 = vpop.permute.xlu0 %1136
          %1140 = vset.pattern.permute.xlu0 0
          %1141 = vperm.xlu0 %1140, %v1133
          %v1142 = vpop.permute.xlu0 %1141
          %v1144 = vmul.f32 %v1130, %v1137
          %v1145 = vmul.f32 %v1131, %v1142
          %v1146 = vld [vmem:[%s447] sm:$0x1]
          %v1148 = vlaneseq
          %v1149 = vshrl.u32 %v1148, 7
          %v1150 = vsub.s32 0, %v1149
          %v1151 = vrot.slane %v1146, %v1150
          %v1153 = vadd.f32 %v1144, %v1151
          %v1154 = vadd.f32 %v1145, %v1151
          %1155 = vst [vmem:[%s427] sm:$0xff] %v1153
          %1156 = vst [vmem:[%s427 + $0x8] sm:$0xff] %v1154
        $region64: #{tpu_custom_call.1} parent=43 // pred_fallthru
          _
        %s1157 = sand.u32 %s219, 1
        %s1158 = scalar_lea.sflag [#allocation4], %s1157
        %s1159 = sand.u32 %s219, 1
        %s1160 = smul.addr %s1159, 16
        %s1161 = scalar_lea.vmem [#allocation8], %s1160
        // Predicated region
        $region65: #{tpu_custom_call.1} parent=43 // pred_check
          %p1162 = pneg %p229
        $region66: #{tpu_custom_call.1} parent=43 // pred_check_branch
          %1164 = sbr.rel (%p1162) target = $region68
        $region67: #{tpu_custom_call.1} parent=43 // pred_region
          %s1165 = smul.u32 2, %s31
          %s1167 = ssub.s32 256, 256
          %1168 = vsyncadd %s1158, %s1167
          %s1169 = smul.addr %s1165, 2
          %s1170 = sadd.s32 %s32, %s1169
          %s1171 = smul.addr %s1170, 128
          %s1172 = scalar_lea.hbm %s6, %s1171
          %s1173 = sshll.u32 %s1161, 4
          %s1174 = int_to_ptr.vmem [resolvable:$true] %s1173
          %1179 = dma.vmem_to_hbm [thread:$0]  %s1174, 256, %s1172, %s1158, 128, 256, 8
        $region68: #{tpu_custom_call.1} parent=43 // pred_fallthru
          _
      $region44: #{tpu_custom_call.1} parent=5 // pred_fallthru
        _
      %p1180 = scmp.le.s32.totalorder 2, %s21
      // Predicated region
      $region69: #{tpu_custom_call.1} parent=5 // pred_check
        %p1181 = pneg %p1180
      $region70: #{tpu_custom_call.1} parent=5 // pred_check_branch
        %1183 = sbr.rel (%p1181) target = $region72
      $region71: #{tpu_custom_call.1} parent=5 // pred_region
        %s1184 = ssub.s32 %s21, 2
        // Predicated region
        $region73: #{tpu_custom_call.1} parent=71 // pred_check
          %p1185 = pneg %p235
        $region74: #{tpu_custom_call.1} parent=71 // pred_check_branch
          %1187 = sbr.rel (%p1185) target = $region76
        $region75: #{tpu_custom_call.1} parent=71 // pred_region
          %s1188 = sand.u32 %s220, 1
          %s1189 = scalar_lea.sflag [#allocation4], %s1188
          %s1190 = sand.u32 %s220, 1
          %s1191 = smul.addr %s1190, 16
          %s1192 = scalar_lea.vmem [#allocation8], %s1191
          %1193 = dma.done %s1189, 256
        $region76: #{tpu_custom_call.1} parent=71 // pred_fallthru
          _
      $region72: #{tpu_custom_call.1} parent=5 // pred_fallthru
        _
    $region6: #{tpu_custom_call.1} parent=1 // loop_footer
      %s25 = sadd.s32 1, %s21
    $region7: #{tpu_custom_call.1} parent=1 // loop_footer_branch
      %20 = sbr.rel target = $region3
    $region8: #{tpu_custom_call.1} parent=1 // loop_exit
      _
    %1194 = vsyncpa [#allocation3], 1
    %s1195 = scalar_lea.sflag [#allocation3], 1
    %1196 = vsyncpa %s1195, 1
    %1197 = vsyncpa [#allocation6], 1
    %s1198 = scalar_lea.sflag [#allocation6], 1
    %1199 = vsyncpa %s1198, 1
    %1200 = vsyncpa [#allocation4], 1
    %s1201 = scalar_lea.sflag [#allocation4], 1
    %1202 = vsyncpa %s1201, 1

</llo_original>
